<compile_context>
chip_gen: v5e
topology: v5e:2x2
jax: 0.10.0
libtpu: 0.0.40
codegen_flags: <defaults>
</compile_context>

<pallas_src>
import math

import jax
import jax.numpy as jnp
from jax.experimental import pallas as pl
from jax.experimental.pallas import tpu as pltpu


def _round_up(x, m):
    return (x + m - 1) // m * m


def _sublstm_kernel(x_ref, h_ref, c_ref, w_ref, r_ref, b_ref,
                    h_out_ref, c_out_ref):
    """One batch tile of the SUBLSTM cell.  All gate math in f32."""
    Sp = c_ref.shape[-1]
    cdt = w_ref.dtype                        # matmul compute dtype (bf16/f32)

    # Two MXU matmuls accumulated in f32; the activation casts ride the VPU.
    pre = jnp.dot(x_ref[...].astype(cdt), w_ref[...],
                  preferred_element_type=jnp.float32)
    pre = pre + jnp.dot(h_ref[...].astype(cdt), r_ref[...],
                        preferred_element_type=jnp.float32)
    pre = pre + b_ref[...]                   # [tm, 4*Sp] f32

    gates = jax.nn.sigmoid(pre)
    # Sp % 128 == 0 -> every gate slice below is lane-dense (full vregs).
    i_g = gates[:, 0 * Sp:1 * Sp]
    f_g = gates[:, 1 * Sp:2 * Sp]
    z_g = gates[:, 2 * Sp:3 * Sp]
    o_g = gates[:, 3 * Sp:4 * Sp]

    c = c_ref[...]                           # f32 cell state
    new_c = f_g * c + z_g - i_g
    new_h = jax.nn.sigmoid(new_c) - o_g

    # Two direct, lane-dense stores (no packed concat temp).
    h_out_ref[...] = new_h.astype(h_out_ref.dtype)
    c_out_ref[...] = new_c.astype(c_out_ref.dtype)
    # NOTE: if profiling ever shows VALU/EUP-bound at big tiles, lower the
    # sigmoids as exp (EUP) + pl.reciprocal(approx=True).  Structural items
    # (weight residency, lane-dense stores, tile size) dominate here.


def make_sublstm_params(W, R, bias, compute_dtype=jnp.bfloat16, lane=128):
    """One-time weight packing/padding (call OUTSIDE any time loop).

    W: [4S, F], R: [4S, S], bias: [4S].  Gate row order MUST be (i, f, z, o),
    matching sublstm_cpp.forward.

    Returns:
      w_T : [F,  4*Sp] compute_dtype   (input  -> gates)
      r_T : [Sp, 4*Sp] compute_dtype   (state  -> gates; zero rows/cols pad)
      b2  : [1,  4*Sp] float32
      Sp  : state size padded up to a multiple of `lane` (lane-dense gates).

    Zero padding is self-consistent through the recurrence: padded h/c lanes
    stay exactly 0 (i=f=z=o=0.5 there, so new_c=0 and new_h=0).
    """
    four_s, F = W.shape
    S = R.shape[1]
    assert four_s == 4 * S and R.shape == (4 * S, S) and bias.shape == (4 * S,)
    Sp = _round_up(S, lane)

    def pad_gate_rows(M):                    # [4S, K] -> [4*Sp, K]
        K = M.shape[1]
        M4 = M.reshape(4, S, K)
        M4 = jnp.pad(M4, ((0, 0), (0, Sp - S), (0, 0)))
        return M4.reshape(4 * Sp, K)

    Wp = pad_gate_rows(W)                                   # [4Sp, F]
    Rp = pad_gate_rows(R)                                   # [4Sp, S]
    Rp = jnp.pad(Rp, ((0, 0), (0, Sp - S)))                 # [4Sp, Sp]
    bp = jnp.pad(bias.reshape(4, S), ((0, 0), (0, Sp - S))).reshape(4 * Sp)

    w_T = Wp.T.astype(compute_dtype)                        # [F, 4Sp]
    r_T = Rp.T.astype(compute_dtype)                        # [Sp, 4Sp]
    b2 = bp.reshape(1, 4 * Sp).astype(jnp.float32)
    return w_T, r_T, b2, Sp


def _choose_tm(B, block_b):
    """Batch tile: multiple of 8, divides B when possible (no pad copies),
    and >= 2 tiles when the batch allows (keeps both v7x TensorCores busy)."""
    tm = min(block_b, B)
    tm = max(8, tm // 8 * 8)
    if tm >= B and B >= 16:
        tm = max(8, (B // 2) // 8 * 8)
    t = tm
    while t > 8 and B % t:
        t -= 8
    if B % t == 0:
        tm = t
    return tm


def sublstm_forward(x, h_tm1, c_tm1, w_T, r_T, b2, *, block_b=512):
    """Single SUBLSTM cell step.

    x: [B, F], h_tm1/c_tm1: [B, S]; w_T/r_T/b2 from make_sublstm_params.
    Returns (new_h, new_c), both [B, S] float32.
    """
    B, F = x.shape
    S = h_tm1.shape[-1]
    Sp = r_T.shape[0]
    assert w_T.shape == (F, 4 * Sp)
    assert r_T.shape == (Sp, 4 * Sp)
    assert b2.shape == (1, 4 * Sp)
    assert h_tm1.shape == (B, S) and c_tm1.shape == (B, S)

    # Pad state lanes up to Sp once (no-op when S % 128 == 0, the realistic
    # case).  No [x, h] concat: x and h go in as separate operands.
    if Sp != S:
        h_in = jnp.pad(h_tm1, ((0, 0), (0, Sp - S)))
        c_in = jnp.pad(c_tm1, ((0, 0), (0, Sp - S)))
    else:
        h_in, c_in = h_tm1, c_tm1
    c_in = c_in.astype(jnp.float32)
    x_in = x

    tm = _choose_tm(B, block_b)
    n_tiles = pl.cdiv(B, tm)
    Bp = n_tiles * tm
    if Bp != B:
        # TODO(synk): mask the ragged tail tile in-kernel instead of padding.
        pad = ((0, Bp - B), (0, 0))
        x_in = jnp.pad(x_in, pad)
        h_in = jnp.pad(h_in, pad)
        c_in = jnp.pad(c_in, pad)

    # Explicit scoped-VMEM budget: single-buffered weights + double-buffered
    # activation/output tiles, clamped so it is valid on every generation
    # (v5e scoped default is 16 MiB; v7x physical VMEM is 64 MiB per TC).
    wbytes = (w_T.size * w_T.dtype.itemsize + r_T.size * r_T.dtype.itemsize
              + b2.size * 4)
    abytes = 2 * tm * (F + Sp) * 4 + 2 * tm * Sp * 4 + 2 * 2 * tm * Sp * 4
    vmem_limit = int(min(64 * 1024 * 1024,
                         max(32 * 1024 * 1024, 2 * (wbytes + abytes))))

    def _run(const_mode):
        kw = {} if const_mode is None else dict(pipeline_mode=const_mode)
        return pl.pallas_call(
            _sublstm_kernel,
            out_shape=(jax.ShapeDtypeStruct((Bp, Sp), jnp.float32),   # new_h
                       jax.ShapeDtypeStruct((Bp, Sp), jnp.float32)),  # new_c
            grid=(n_tiles,),
            in_specs=[
                pl.BlockSpec((tm, F), lambda i: (i, 0)),              # x tile
                pl.BlockSpec((tm, Sp), lambda i: (i, 0)),             # h tile
                pl.BlockSpec((tm, Sp), lambda i: (i, 0)),             # c tile
                pl.BlockSpec((F, 4 * Sp), lambda i: (0, 0), **kw),    # W^T
                pl.BlockSpec((Sp, 4 * Sp), lambda i: (0, 0), **kw),   # R^T
                pl.BlockSpec((1, 4 * Sp), lambda i: (0, 0), **kw),    # bias
            ],
            out_specs=(pl.BlockSpec((tm, Sp), lambda i: (i, 0)),
                       pl.BlockSpec((tm, Sp), lambda i: (i, 0))),
            compiler_params=pltpu.CompilerParams(
                dimension_semantics=("parallel",),
                vmem_limit_bytes=vmem_limit),
        )(x_in, h_in, c_in, w_T, r_T, b2)

    try:
        # Constant-index weight/bias blocks: single-buffer them (no point in
        # double-buffering a block that never changes; halves weight VMEM).
        h_out, c_out = _run(pl.Buffered(1))
    except Exception:
        # Fallback for Pallas builds without BlockSpec.pipeline_mode support.
        h_out, c_out = _run(None)

    if Bp != B or Sp != S:
        return h_out[:B, :S], c_out[:B, :S]
    return h_out, c_out


def sublstm_reference(x, h_tm1, c_tm1, W, R, bias):
    pre = x @ W.T + h_tm1 @ R.T + bias
    gates = jax.nn.sigmoid(pre)
    i_g, f_g, z_g, o_g = jnp.split(gates, 4, axis=-1)
    new_c = f_g * c_tm1 + z_g - i_g
    new_h = jax.nn.sigmoid(new_c) - o_g
    return new_h, new_c


if __name__ == "__main__":
    B = 16               # 2 batch tiles of 8 -> exercises the grid / megacore
    input_features = 16
    state_size = 32      # pads to Sp=128 -> lane-dense gate slices & stores

    key = jax.random.PRNGKey(0)
    kx, kh, kc, kw, kr, kb = jax.random.split(key, 6)

    # Deterministic uniform(-stdv, +stdv) init, mirroring reset_parameters().
    stdv = 1.0 / math.sqrt(state_size)
    W = jax.random.uniform(kw, (4 * state_size, input_features),
                           minval=-stdv, maxval=stdv, dtype=jnp.float32)
    R = jax.random.uniform(kr, (4 * state_size, state_size),
                           minval=-stdv, maxval=stdv, dtype=jnp.float32)
    bias = jax.random.uniform(kb, (4 * state_size,),
                              minval=-stdv, maxval=stdv, dtype=jnp.float32)

    x = jax.random.normal(kx, (B, input_features), dtype=jnp.float32)
    h0 = jax.random.normal(kh, (B, state_size), dtype=jnp.float32)
    c0 = jax.random.normal(kc, (B, state_size), dtype=jnp.float32)

    ref_h, ref_c = sublstm_reference(x, h0, c0, W, R, bias)

    # f32 matmul path.  NOTE: f32 dots still run on the MXU (bf16 passes) at
    # default precision, so this is tolerance-checked, not bit-exact.
    w32, r32, b32, _ = make_sublstm_params(W, R, bias, compute_dtype=jnp.float32)
    h_f32, c_f32 = sublstm_forward(x, h0, c0, w32, r32, b32)
    jax.block_until_ready((h_f32, c_f32))
    assert h_f32.shape == (B, state_size) and c_f32.shape == (B, state_size)
    assert jnp.allclose(h_f32, ref_h, atol=5e-3, rtol=1e-3)
    assert jnp.allclose(c_f32, ref_c, atol=5e-3, rtol=1e-3)

    # bf16 matmul path (perf default; f32 accumulate + f32 cell state).
    w16, r16, b16, _ = make_sublstm_params(W, R, bias, compute_dtype=jnp.bfloat16)
    h_bf16, c_bf16 = sublstm_forward(x, h0, c0, w16, r16, b16)
    jax.block_until_ready((h_bf16, c_bf16))
    assert jnp.allclose(h_bf16, ref_h, atol=5e-2)
    assert jnp.allclose(c_bf16, ref_c, atol=5e-2)

    # Ragged batch (exercises the pad-the-tail fallback path).
    hr, cr = sublstm_forward(x[:12], h0[:12], c0[:12], w16, r16, b16)
    jax.block_until_ready((hr, cr))
    assert hr.shape == (12, state_size)
    assert jnp.allclose(hr, ref_h[:12], atol=5e-2)
    assert jnp.allclose(cr, ref_c[:12], atol=5e-2)

    print("KERNEL_OK")
</pallas_src>

<mosaic_0001>
module attributes {stable_mosaic.version = 11 : i64} {
  func.func @_sublstm_kernel(%arg0: i32, %arg1: memref<8x16xf32, #tpu.memory_space<vmem>>, %arg2: memref<8x128xf32, #tpu.memory_space<vmem>>, %arg3: memref<8x128xf32, #tpu.memory_space<vmem>>, %arg4: memref<16x512xf32, #tpu.memory_space<vmem>>, %arg5: memref<128x512xf32, #tpu.memory_space<vmem>>, %arg6: memref<1x512xf32, #tpu.memory_space<vmem>>, %arg7: memref<8x128xf32, #tpu.memory_space<vmem>>, %arg8: memref<8x128xf32, #tpu.memory_space<vmem>>) attributes {dimension_semantics = [#tpu.dimension_semantics<parallel>], iteration_bounds = array<i64: 2>, scalar_prefetch = 0 : i64, scratch_operands = 0 : i64, tpu.core_type = #tpu.core_type<tc>, window_params = [{transform_indices = @transform_0, window_bounds = array<i64: 8, 16>}, {transform_indices = @transform_1, window_bounds = array<i64: 8, 128>}, {transform_indices = @transform_2, window_bounds = array<i64: 8, 128>}, {pipeline_mode = #tpu.pipeline_mode<synchronous>, transform_indices = @transform_3, window_bounds = array<i64: 16, 512>}, {pipeline_mode = #tpu.pipeline_mode<synchronous>, transform_indices = @transform_4, window_bounds = array<i64: 128, 512>}, {pipeline_mode = #tpu.pipeline_mode<synchronous>, transform_indices = @transform_5, window_bounds = array<i64: 1, 512>}, {transform_indices = @transform_6, window_bounds = array<i64: 8, 128>}, {transform_indices = @transform_7, window_bounds = array<i64: 8, 128>}]} {
    %c0 = arith.constant 0 : index
    %c0_0 = arith.constant 0 : index
    %0 = vector.load %arg1[%c0, %c0_0] : memref<8x16xf32, #tpu.memory_space<vmem>>, vector<8x16xf32>
    %c0_1 = arith.constant 0 : index
    %c0_2 = arith.constant 0 : index
    %1 = vector.load %arg4[%c0_1, %c0_2] : memref<16x512xf32, #tpu.memory_space<vmem>>, vector<16x512xf32>
    %cst = arith.constant dense<0.000000e+00> : vector<8x512xf32>
    %2 = tpu.matmul %0, %1, %cst {dimension_numbers = #tpu.dot_dimension_numbers<[1], [0], [0], [1], [0, 0, 1, 1], [], []>} : vector<8x16xf32>, vector<16x512xf32>, vector<8x512xf32> -> vector<8x512xf32>
    %c0_3 = arith.constant 0 : index
    %c0_4 = arith.constant 0 : index
    %3 = vector.load %arg2[%c0_3, %c0_4] : memref<8x128xf32, #tpu.memory_space<vmem>>, vector<8x128xf32>
    %c0_5 = arith.constant 0 : index
    %c0_6 = arith.constant 0 : index
    %4 = vector.load %arg5[%c0_5, %c0_6] : memref<128x512xf32, #tpu.memory_space<vmem>>, vector<128x512xf32>
    %cst_7 = arith.constant dense<0.000000e+00> : vector<8x512xf32>
    %5 = tpu.matmul %3, %4, %cst_7 {dimension_numbers = #tpu.dot_dimension_numbers<[1], [0], [0], [1], [0, 0, 1, 1], [], []>} : vector<8x128xf32>, vector<128x512xf32>, vector<8x512xf32> -> vector<8x512xf32>
    %6 = arith.addf %2, %5 : vector<8x512xf32>
    %c0_8 = arith.constant 0 : index
    %c0_9 = arith.constant 0 : index
    %7 = vector.load %arg6[%c0_8, %c0_9] : memref<1x512xf32, #tpu.memory_space<vmem>>, vector<1x512xf32>
    %8 = vector.broadcast %7 : vector<1x512xf32> to vector<8x512xf32>
    %9 = arith.addf %6, %8 : vector<8x512xf32>
    %10 = arith.negf %9 : vector<8x512xf32>
    %11 = math.exp %10 : vector<8x512xf32>
    %cst_10 = arith.constant 1.000000e+00 : f32
    %12 = vector.broadcast %cst_10 : f32 to vector<8x512xf32>
    %13 = arith.addf %12, %11 : vector<8x512xf32>
    %14 = arith.divf %12, %13 : vector<8x512xf32>
    %15 = vector.extract_strided_slice %14 {offsets = [0, 0], sizes = [8, 128], strides = [1, 1]} : vector<8x512xf32> to vector<8x128xf32>
    %16 = vector.extract_strided_slice %14 {offsets = [0, 128], sizes = [8, 128], strides = [1, 1]} : vector<8x512xf32> to vector<8x128xf32>
    %17 = vector.extract_strided_slice %14 {offsets = [0, 256], sizes = [8, 128], strides = [1, 1]} : vector<8x512xf32> to vector<8x128xf32>
    %18 = vector.extract_strided_slice %14 {offsets = [0, 384], sizes = [8, 128], strides = [1, 1]} : vector<8x512xf32> to vector<8x128xf32>
    %c0_11 = arith.constant 0 : index
    %c0_12 = arith.constant 0 : index
    %19 = vector.load %arg3[%c0_11, %c0_12] : memref<8x128xf32, #tpu.memory_space<vmem>>, vector<8x128xf32>
    %20 = arith.mulf %16, %19 : vector<8x128xf32>
    %21 = arith.addf %20, %17 : vector<8x128xf32>
    %22 = arith.subf %21, %15 : vector<8x128xf32>
    %23 = arith.negf %22 : vector<8x128xf32>
    %24 = math.exp %23 : vector<8x128xf32>
    %cst_13 = arith.constant 1.000000e+00 : f32
    %25 = vector.broadcast %cst_13 : f32 to vector<8x128xf32>
    %26 = arith.addf %25, %24 : vector<8x128xf32>
    %27 = arith.divf %25, %26 : vector<8x128xf32>
    %28 = arith.subf %27, %18 : vector<8x128xf32>
    %c0_14 = arith.constant 0 : index
    %c0_15 = arith.constant 0 : index
    %29 = vector.load %arg7[%c0_14, %c0_15] : memref<8x128xf32, #tpu.memory_space<vmem>>, vector<8x128xf32>
    tpu.vector_store %arg7[%c0_14, %c0_15], %28 {strides = array<i32>} : memref<8x128xf32, #tpu.memory_space<vmem>>, vector<8x128xf32>,
    %c0_16 = arith.constant 0 : index
    %c0_17 = arith.constant 0 : index
    %30 = vector.load %arg8[%c0_16, %c0_17] : memref<8x128xf32, #tpu.memory_space<vmem>>, vector<8x128xf32>
    tpu.vector_store %arg8[%c0_16, %c0_17], %22 {strides = array<i32>} : memref<8x128xf32, #tpu.memory_space<vmem>>, vector<8x128xf32>,
    return
  }
  func.func @transform_0(%arg0: i32) -> (i32, i32) {
    %c0_i32 = arith.constant 0 : i32
    %c0_i32_0 = arith.constant 0 : i32
    return %arg0, %c0_i32 : i32, i32
  }
  func.func @transform_1(%arg0: i32) -> (i32, i32) {
    %c0_i32 = arith.constant 0 : i32
    %c0_i32_0 = arith.constant 0 : i32
    return %arg0, %c0_i32 : i32, i32
  }
  func.func @transform_2(%arg0: i32) -> (i32, i32) {
    %c0_i32 = arith.constant 0 : i32
    %c0_i32_0 = arith.constant 0 : i32
    return %arg0, %c0_i32 : i32, i32
  }
  func.func @transform_3(%arg0: i32) -> (i32, i32) {
    %c0_i32 = arith.constant 0 : i32
    %c0_i32_0 = arith.constant 0 : i32
    %c0_i32_1 = arith.constant 0 : i32
    return %c0_i32, %c0_i32_0 : i32, i32
  }
  func.func @transform_4(%arg0: i32) -> (i32, i32) {
    %c0_i32 = arith.constant 0 : i32
    %c0_i32_0 = arith.constant 0 : i32
    %c0_i32_1 = arith.constant 0 : i32
    return %c0_i32, %c0_i32_0 : i32, i32
  }
  func.func @transform_5(%arg0: i32) -> (i32, i32) {
    %c0_i32 = arith.constant 0 : i32
    %c0_i32_0 = arith.constant 0 : i32
    %c0_i32_1 = arith.constant 0 : i32
    return %c0_i32, %c0_i32_0 : i32, i32
  }
  func.func @transform_6(%arg0: i32) -> (i32, i32) {
    %c0_i32 = arith.constant 0 : i32
    %c0_i32_0 = arith.constant 0 : i32
    return %arg0, %c0_i32 : i32, i32
  }
  func.func @transform_7(%arg0: i32) -> (i32, i32) {
    %c0_i32 = arith.constant 0 : i32
    %c0_i32_0 = arith.constant 0 : i32
    return %arg0, %c0_i32 : i32, i32
  }
}

module attributes {stable_mosaic.version = 11 : i64} {
  func.func @_sublstm_kernel(%arg0: i32, %arg1: memref<8x16xf32, #tpu.memory_space<vmem>>, %arg2: memref<8x128xf32, #tpu.memory_space<vmem>>, %arg3: memref<8x128xf32, #tpu.memory_space<vmem>>, %arg4: memref<16x512xf32, #tpu.memory_space<vmem>>, %arg5: memref<128x512xf32, #tpu.memory_space<vmem>>, %arg6: memref<1x512xf32, #tpu.memory_space<vmem>>, %arg7: memref<8x128xf32, #tpu.memory_space<vmem>>, %arg8: memref<8x128xf32, #tpu.memory_space<vmem>>) attributes {dimension_semantics = [#tpu.dimension_semantics<parallel>], iteration_bounds = array<i64: 2>, scalar_prefetch = 0 : i64, scratch_operands = 0 : i64, tpu.core_type = #tpu.core_type<tc>, window_params = [{transform_indices = @transform_0, window_bounds = array<i64: 8, 16>}, {transform_indices = @transform_1, window_bounds = array<i64: 8, 128>}, {transform_indices = @transform_2, window_bounds = array<i64: 8, 128>}, {pipeline_mode = #tpu.pipeline_mode<synchronous>, transform_indices = @transform_3, window_bounds = array<i64: 16, 512>}, {pipeline_mode = #tpu.pipeline_mode<synchronous>, transform_indices = @transform_4, window_bounds = array<i64: 128, 512>}, {pipeline_mode = #tpu.pipeline_mode<synchronous>, transform_indices = @transform_5, window_bounds = array<i64: 1, 512>}, {transform_indices = @transform_6, window_bounds = array<i64: 8, 128>}, {transform_indices = @transform_7, window_bounds = array<i64: 8, 128>}]} {
    %c0 = arith.constant 0 : index
    %c0_0 = arith.constant 0 : index
    %0 = vector.load %arg1[%c0, %c0_0] : memref<8x16xf32, #tpu.memory_space<vmem>>, vector<8x16xf32>
    %c0_1 = arith.constant 0 : index
    %c0_2 = arith.constant 0 : index
    %1 = vector.load %arg4[%c0_1, %c0_2] : memref<16x512xf32, #tpu.memory_space<vmem>>, vector<16x512xf32>
    %cst = arith.constant dense<0.000000e+00> : vector<8x512xf32>
    %2 = tpu.matmul %0, %1, %cst {dimension_numbers = #tpu.dot_dimension_numbers<[1], [0], [0], [1], [0, 0, 1, 1], [], []>} : vector<8x16xf32>, vector<16x512xf32>, vector<8x512xf32> -> vector<8x512xf32>
    %c0_3 = arith.constant 0 : index
    %c0_4 = arith.constant 0 : index
    %3 = vector.load %arg2[%c0_3, %c0_4] : memref<8x128xf32, #tpu.memory_space<vmem>>, vector<8x128xf32>
    %c0_5 = arith.constant 0 : index
    %c0_6 = arith.constant 0 : index
    %4 = vector.load %arg5[%c0_5, %c0_6] : memref<128x512xf32, #tpu.memory_space<vmem>>, vector<128x512xf32>
    %cst_7 = arith.constant dense<0.000000e+00> : vector<8x512xf32>
    %5 = tpu.matmul %3, %4, %cst_7 {dimension_numbers = #tpu.dot_dimension_numbers<[1], [0], [0], [1], [0, 0, 1, 1], [], []>} : vector<8x128xf32>, vector<128x512xf32>, vector<8x512xf32> -> vector<8x512xf32>
    %6 = arith.addf %2, %5 : vector<8x512xf32>
    %c0_8 = arith.constant 0 : index
    %c0_9 = arith.constant 0 : index
    %7 = vector.load %arg6[%c0_8, %c0_9] : memref<1x512xf32, #tpu.memory_space<vmem>>, vector<1x512xf32>
    %8 = vector.broadcast %7 : vector<1x512xf32> to vector<8x512xf32>
    %9 = arith.addf %6, %8 : vector<8x512xf32>
    %10 = arith.negf %9 : vector<8x512xf32>
    %11 = math.exp %10 : vector<8x512xf32>
    %cst_10 = arith.constant 1.000000e+00 : f32
    %12 = vector.broadcast %cst_10 : f32 to vector<8x512xf32>
    %13 = arith.addf %12, %11 : vector<8x512xf32>
    %14 = arith.divf %12, %13 : vector<8x512xf32>
    %15 = vector.extract_strided_slice %14 {offsets = [0, 0], sizes = [8, 128], strides = [1, 1]} : vector<8x512xf32> to vector<8x128xf32>
    %16 = vector.extract_strided_slice %14 {offsets = [0, 128], sizes = [8, 128], strides = [1, 1]} : vector<8x512xf32> to vector<8x128xf32>
    %17 = vector.extract_strided_slice %14 {offsets = [0, 256], sizes = [8, 128], strides = [1, 1]} : vector<8x512xf32> to vector<8x128xf32>
    %18 = vector.extract_strided_slice %14 {offsets = [0, 384], sizes = [8, 128], strides = [1, 1]} : vector<8x512xf32> to vector<8x128xf32>
    %c0_11 = arith.constant 0 : index
    %c0_12 = arith.constant 0 : index
    %19 = vector.load %arg3[%c0_11, %c0_12] : memref<8x128xf32, #tpu.memory_space<vmem>>, vector<8x128xf32>
    %20 = arith.mulf %16, %19 : vector<8x128xf32>
    %21 = arith.addf %20, %17 : vector<8x128xf32>
    %22 = arith.subf %21, %15 : vector<8x128xf32>
    %23 = arith.negf %22 : vector<8x128xf32>
    %24 = math.exp %23 : vector<8x128xf32>
    %cst_13 = arith.constant 1.000000e+00 : f32
    %25 = vector.broadcast %cst_13 : f32 to vector<8x128xf32>
    %26 = arith.addf %25, %24 : vector<8x128xf32>
    %27 = arith.divf %25, %26 : vector<8x128xf32>
    %28 = arith.subf %27, %18 : vector<8x128xf32>
    %c0_14 = arith.constant 0 : index
    %c0_15 = arith.constant 0 : index
    %29 = vector.load %arg7[%c0_14, %c0_15] : memref<8x128xf32, #tpu.memory_space<vmem>>, vector<8x128xf32>
    tpu.vector_store %arg7[%c0_14, %c0_15], %28 {strides = array<i32>} : memref<8x128xf32, #tpu.memory_space<vmem>>, vector<8x128xf32>,
    %c0_16 = arith.constant 0 : index
    %c0_17 = arith.constant 0 : index
    %30 = vector.load %arg8[%c0_16, %c0_17] : memref<8x128xf32, #tpu.memory_space<vmem>>, vector<8x128xf32>
    tpu.vector_store %arg8[%c0_16, %c0_17], %22 {strides = array<i32>} : memref<8x128xf32, #tpu.memory_space<vmem>>, vector<8x128xf32>,
    return
  }
  func.func @transform_0(%arg0: i32) -> (i32, i32) {
    %c0_i32 = arith.constant 0 : i32
    %c0_i32_0 = arith.constant 0 : i32
    return %arg0, %c0_i32 : i32, i32
  }
  func.func @transform_1(%arg0: i32) -> (i32, i32) {
    %c0_i32 = arith.constant 0 : i32
    %c0_i32_0 = arith.constant 0 : i32
    return %arg0, %c0_i32 : i32, i32
  }
  func.func @transform_2(%arg0: i32) -> (i32, i32) {
    %c0_i32 = arith.constant 0 : i32
    %c0_i32_0 = arith.constant 0 : i32
    return %arg0, %c0_i32 : i32, i32
  }
  func.func @transform_3(%arg0: i32) -> (i32, i32) {
    %c0_i32 = arith.constant 0 : i32
    %c0_i32_0 = arith.constant 0 : i32
    %c0_i32_1 = arith.constant 0 : i32
    return %c0_i32, %c0_i32_0 : i32, i32
  }
  func.func @transform_4(%arg0: i32) -> (i32, i32) {
    %c0_i32 = arith.constant 0 : i32
    %c0_i32_0 = arith.constant 0 : i32
    %c0_i32_1 = arith.constant 0 : i32
    return %c0_i32, %c0_i32_0 : i32, i32
  }
  func.func @transform_5(%arg0: i32) -> (i32, i32) {
    %c0_i32 = arith.constant 0 : i32
    %c0_i32_0 = arith.constant 0 : i32
    %c0_i32_1 = arith.constant 0 : i32
    return %c0_i32, %c0_i32_0 : i32, i32
  }
  func.func @transform_6(%arg0: i32) -> (i32, i32) {
    %c0_i32 = arith.constant 0 : i32
    %c0_i32_0 = arith.constant 0 : i32
    return %arg0, %c0_i32 : i32, i32
  }
  func.func @transform_7(%arg0: i32) -> (i32, i32) {
    %c0_i32 = arith.constant 0 : i32
    %c0_i32_0 = arith.constant 0 : i32
    return %arg0, %c0_i32 : i32, i32
  }
}

</mosaic_0001>

<llo_original>
// kernel: tpu_custom_call.1
$region0: #{tpu_custom_call.1}
  #allocation0 [shape = 'u32[]', space=smem, size = 0x4, offset = 0x4, fixed_abs, tag = 'smem constant byte address 0x4 - core index']
  #allocation1 [shape = 'u32[72,128]{1,0:T(1,128)}', space=vmem, size = 0x9000, scoped, tag = 'internal scratch']
  %s0 = inlined_call_operand.hbm [shape: f32[16,16], index: 0, kind: input, shape index: {}]
  %s1 = inlined_call_operand.hbm [shape: f32[16,128], index: 1, kind: input, shape index: {}]
  %s2 = inlined_call_operand.hbm [shape: f32[16,128], index: 2, kind: input, shape index: {}]
  %s3 = inlined_call_operand.hbm [shape: f32[16,512], index: 3, kind: input, shape index: {}]
  %s4 = inlined_call_operand.hbm [shape: f32[128,512], index: 4, kind: input, shape index: {}]
  %s5 = inlined_call_operand.vmem [shape: f32[1,512], index: 5, kind: input, shape index: {}]
  %s6 = inlined_call_operand.hbm [shape: f32[16,128], index: 6, kind: output, shape index: {0}]
  %s7 = inlined_call_operand.hbm [shape: f32[16,128], index: 7, kind: output, shape index: {1}]
  %8 = xla_tuple %s6, %s7
  %s9 = sld [smem:[#allocation0]]
  $region85: #{tpu_custom_call.1} parent=0
    _
  %s11 = ssub.s32 1, %s9
  %s12 = scalar_select 0, %s11, %s9
  $region1: #{tpu_custom_call.1} parent=0
    #allocation2 [shape = 'u8[8192]{0}', space=vmem, size = 0x2000, scoped, tag = 'input window, operand 0']
    #allocation3 [shape = 's32[2]{0}', space=sflag, size = 0x8, scoped, tag = 'scoped memory for tpu_custom_call.1']
    #allocation4 [shape = 's32[2]{0}', space=sflag, size = 0x8, scoped, tag = 'scoped memory for tpu_custom_call.1']
    #allocation5 [shape = 'u8[8192]{0}', space=vmem, size = 0x2000, scoped, tag = 'input window, operand 1']
    #allocation6 [shape = 's32[2]{0}', space=sflag, size = 0x8, scoped, tag = 'scoped memory for tpu_custom_call.1']
    #allocation7 [shape = 'u8[8192]{0}', space=vmem, size = 0x2000, scoped, tag = 'input window, operand 2']
    #allocation8 [shape = 'u8[32768]{0}', space=vmem, size = 0x8000, scoped, tag = 'input window, operand 3, single buffered']
    #allocation9 [shape = 's32[1]{0}', space=sflag, size = 0x4, scoped, tag = 'scoped memory for tpu_custom_call.1']
    #allocation10 [shape = 'u8[262144]{0}', space=vmem, size = 0x40000, scoped, tag = 'input window, operand 4, single buffered']
    #allocation11 [shape = 'u8[8192]{0}', space=vmem, size = 0x2000, scoped, tag = 'output window, operand 0']
    #allocation12 [shape = 'u8[8192]{0}', space=vmem, size = 0x2000, scoped, tag = 'output window, operand 1']
    #allocation13 [shape = 's32[2]{0}', space=sflag, size = 0x8, scoped, tag = 'scoped memory for tpu_custom_call.1']
    %13 = vsyncpa [#allocation3], 0
    %s14 = scalar_lea.sflag [#allocation3], 1
    %15 = vsyncpa %s14, 0
    %16 = vsyncpa [#allocation6], 0
    %s17 = scalar_lea.sflag [#allocation6], 1
    %18 = vsyncpa %s17, 0
    %19 = vsyncpa [#allocation9], 0
    %20 = vsyncpa [#allocation4], 0
    %s21 = scalar_lea.sflag [#allocation4], 1
    %22 = vsyncpa %s21, 0
    %23 = vsyncpa [#allocation13], 0
    %s24 = scalar_lea.sflag [#allocation13], 1
    %25 = vsyncpa %s24, 0
    loop: start=0, step=1, limit=4
    $region2: #{tpu_custom_call.1} parent=1 // loop_pre_header
      _
    $region3: #{tpu_custom_call.1} parent=1 // loop_header
      %s27 = sphi 0, %s31
      %p28 = scmp.ge.s32.totalorder %s27, 4
      %s37 = sphi 0, %s39
      %s40 = sphi 0, %s37
      %s41 = sphi 0, %s40
      %s57 = sphi 0, %s41
      %s63 = sphi 0, %s65
      %s66 = sphi 0, %s63
      %s67 = sphi 0, %s66
      %s83 = sphi 0, %s67
      %s89 = sphi 0, %s91
      %s92 = sphi 0, %s89
      %s93 = sphi 0, %s92
      %s109 = sphi 0, %s93
      %s113 = sphi 0, %s113
      %s115 = sphi 0, %s113
      %s116 = sphi 0, %s115
      %s130 = sphi 0, %s116
      %s134 = sphi 0, %s134
      %s136 = sphi 0, %s134
      %s137 = sphi 0, %s136
      %s151 = sphi 0, %s137
      %s155 = sphi 0, %s155
      %s157 = sphi 0, %s155
      %s158 = sphi 0, %s157
      %s172 = sphi 0, %s158
      %s178 = sphi 0, %s180
      %s181 = sphi 0, %s178
      %s182 = sphi 0, %s181
      %s198 = sphi 0, %s182
      %s204 = sphi 0, %s206
      %s207 = sphi 0, %s204
      %s208 = sphi 0, %s207
      %s224 = sphi 0, %s208
    $region4: #{tpu_custom_call.1} parent=1 // loop_header_branch
      %30 = sbr.rel (%p28) target = $region8
    $region5: #{tpu_custom_call.1} parent=1 // loop_body
      %s32 = ssub.s32 %s27, 1
      %s33 = ssub.s32 %s27, 2
      %s34 = sadd.s32 %s27, 1
      %s35 = ssub.s32 %s27, %s34
      %p36 = scmp.eq.s32.totalorder %s35, 0
      %s38 = sadd.s32 %s37, 1
      %s39 = scalar_select %p36, %s37, %s38
      %p42 = pneg %p36
      %p43 = scmp.eq.s32.totalorder %s27, 1
      %p44 = por %p42, %p43
      %p45 = scmp.ne.s32.totalorder %s37, %s40
      %p46 = scmp.eq.s32.totalorder %s27, 0
      %p47 = por %p45, %p46
      %p48 = scmp.ne.s32.totalorder %s37, %s40
      %p49 = scmp.eq.s32.totalorder %s32, 1
      %p50 = por %p48, %p49
      %p51 = scmp.ne.s32.totalorder %s40, %s41
      %p52 = scmp.eq.s32.totalorder %s32, 0
      %p53 = por %p51, %p52
      %p54 = scmp.ne.s32.totalorder %s40, %s41
      %p55 = scmp.eq.s32.totalorder %s33, 1
      %p56 = por %p54, %p55
      %p58 = scmp.ne.s32.totalorder %s41, %s57
      %p59 = scmp.eq.s32.totalorder %s33, 0
      %p60 = por %p58, %p59
      %s61 = ssub.s32 %s27, %s34
      %p62 = scmp.eq.s32.totalorder %s61, 0
      %s64 = sadd.s32 %s63, 1
      %s65 = scalar_select %p62, %s63, %s64
      %p68 = pneg %p62
      %p69 = scmp.eq.s32.totalorder %s27, 1
      %p70 = por %p68, %p69
      %p71 = scmp.ne.s32.totalorder %s63, %s66
      %p72 = scmp.eq.s32.totalorder %s27, 0
      %p73 = por %p71, %p72
      %p74 = scmp.ne.s32.totalorder %s63, %s66
      %p75 = scmp.eq.s32.totalorder %s32, 1
      %p76 = por %p74, %p75
      %p77 = scmp.ne.s32.totalorder %s66, %s67
      %p78 = scmp.eq.s32.totalorder %s32, 0
      %p79 = por %p77, %p78
      %p80 = scmp.ne.s32.totalorder %s66, %s67
      %p81 = scmp.eq.s32.totalorder %s33, 1
      %p82 = por %p80, %p81
      %p84 = scmp.ne.s32.totalorder %s67, %s83
      %p85 = scmp.eq.s32.totalorder %s33, 0
      %p86 = por %p84, %p85
      %s87 = ssub.s32 %s27, %s34
      %p88 = scmp.eq.s32.totalorder %s87, 0
      %s90 = sadd.s32 %s89, 1
      %s91 = scalar_select %p88, %s89, %s90
      %p94 = pneg %p88
      %p95 = scmp.eq.s32.totalorder %s27, 1
      %p96 = por %p94, %p95
      %p97 = scmp.ne.s32.totalorder %s89, %s92
      %p98 = scmp.eq.s32.totalorder %s27, 0
      %p99 = por %p97, %p98
      %p100 = scmp.ne.s32.totalorder %s89, %s92
      %p101 = scmp.eq.s32.totalorder %s32, 1
      %p102 = por %p100, %p101
      %p103 = scmp.ne.s32.totalorder %s92, %s93
      %p104 = scmp.eq.s32.totalorder %s32, 0
      %p105 = por %p103, %p104
      %p106 = scmp.ne.s32.totalorder %s92, %s93
      %p107 = scmp.eq.s32.totalorder %s33, 1
      %p108 = por %p106, %p107
      %p110 = scmp.ne.s32.totalorder %s93, %s109
      %p111 = scmp.eq.s32.totalorder %s33, 0
      %p112 = por %p110, %p111
      %s114 = sadd.s32 %s113, 1
      %p117 = scmp.eq.s32.totalorder %s27, 1
      %p118 = scmp.ne.s32.totalorder %s113, %s115
      %p119 = scmp.eq.s32.totalorder %s27, 0
      %p120 = por %p118, %p119
      %p121 = scmp.ne.s32.totalorder %s113, %s115
      %p122 = scmp.eq.s32.totalorder %s32, 1
      %p123 = por %p121, %p122
      %p124 = scmp.ne.s32.totalorder %s115, %s116
      %p125 = scmp.eq.s32.totalorder %s32, 0
      %p126 = por %p124, %p125
      %p127 = scmp.ne.s32.totalorder %s115, %s116
      %p128 = scmp.eq.s32.totalorder %s33, 1
      %p129 = por %p127, %p128
      %p131 = scmp.ne.s32.totalorder %s116, %s130
      %p132 = scmp.eq.s32.totalorder %s33, 0
      %p133 = por %p131, %p132
      %s135 = sadd.s32 %s134, 1
      %p138 = scmp.eq.s32.totalorder %s27, 1
      %p139 = scmp.ne.s32.totalorder %s134, %s136
      %p140 = scmp.eq.s32.totalorder %s27, 0
      %p141 = por %p139, %p140
      %p142 = scmp.ne.s32.totalorder %s134, %s136
      %p143 = scmp.eq.s32.totalorder %s32, 1
      %p144 = por %p142, %p143
      %p145 = scmp.ne.s32.totalorder %s136, %s137
      %p146 = scmp.eq.s32.totalorder %s32, 0
      %p147 = por %p145, %p146
      %p148 = scmp.ne.s32.totalorder %s136, %s137
      %p149 = scmp.eq.s32.totalorder %s33, 1
      %p150 = por %p148, %p149
      %p152 = scmp.ne.s32.totalorder %s137, %s151
      %p153 = scmp.eq.s32.totalorder %s33, 0
      %p154 = por %p152, %p153
      %s156 = sadd.s32 %s155, 1
      %p159 = scmp.eq.s32.totalorder %s27, 1
      %p160 = scmp.ne.s32.totalorder %s155, %s157
      %p161 = scmp.eq.s32.totalorder %s27, 0
      %p162 = por %p160, %p161
      %p163 = scmp.ne.s32.totalorder %s155, %s157
      %p164 = scmp.eq.s32.totalorder %s32, 1
      %p165 = por %p163, %p164
      %p166 = scmp.ne.s32.totalorder %s157, %s158
      %p167 = scmp.eq.s32.totalorder %s32, 0
      %p168 = por %p166, %p167
      %p169 = scmp.ne.s32.totalorder %s157, %s158
      %p170 = scmp.eq.s32.totalorder %s33, 1
      %p171 = por %p169, %p170
      %p173 = scmp.ne.s32.totalorder %s158, %s172
      %p174 = scmp.eq.s32.totalorder %s33, 0
      %p175 = por %p173, %p174
      %s176 = ssub.s32 %s27, %s34
      %p177 = scmp.eq.s32.totalorder %s176, 0
      %s179 = sadd.s32 %s178, 1
      %s180 = scalar_select %p177, %s178, %s179
      %p183 = pneg %p177
      %p184 = scmp.eq.s32.totalorder %s27, 1
      %p185 = por %p183, %p184
      %p186 = scmp.ne.s32.totalorder %s178, %s181
      %p187 = scmp.eq.s32.totalorder %s27, 0
      %p188 = por %p186, %p187
      %p189 = scmp.ne.s32.totalorder %s178, %s181
      %p190 = scmp.eq.s32.totalorder %s32, 1
      %p191 = por %p189, %p190
      %p192 = scmp.ne.s32.totalorder %s181, %s182
      %p193 = scmp.eq.s32.totalorder %s32, 0
      %p194 = por %p192, %p193
      %p195 = scmp.ne.s32.totalorder %s181, %s182
      %p196 = scmp.eq.s32.totalorder %s33, 1
      %p197 = por %p195, %p196
      %p199 = scmp.ne.s32.totalorder %s182, %s198
      %p200 = scmp.eq.s32.totalorder %s33, 0
      %p201 = por %p199, %p200
      %s202 = ssub.s32 %s27, %s34
      %p203 = scmp.eq.s32.totalorder %s202, 0
      %s205 = sadd.s32 %s204, 1
      %s206 = scalar_select %p203, %s204, %s205
      %p209 = pneg %p203
      %p210 = scmp.eq.s32.totalorder %s27, 1
      %p211 = por %p209, %p210
      %p212 = scmp.ne.s32.totalorder %s204, %s207
      %p213 = scmp.eq.s32.totalorder %s27, 0
      %p214 = por %p212, %p213
      %p215 = scmp.ne.s32.totalorder %s204, %s207
      %p216 = scmp.eq.s32.totalorder %s32, 1
      %p217 = por %p215, %p216
      %p218 = scmp.ne.s32.totalorder %s207, %s208
      %p219 = scmp.eq.s32.totalorder %s32, 0
      %p220 = por %p218, %p219
      %p221 = scmp.ne.s32.totalorder %s207, %s208
      %p222 = scmp.eq.s32.totalorder %s33, 1
      %p223 = por %p221, %p222
      %p225 = scmp.ne.s32.totalorder %s208, %s224
      %p226 = scmp.eq.s32.totalorder %s33, 0
      %p227 = por %p225, %p226
      %p228 = scmp.le.s32.totalorder 1, %s27
      %p229 = scmp.lt.s32.totalorder %s27, 3
      %p230 = pnand %p228, %p229
      %p231 = pneg %p230
      // Predicated region
      $region9: #{tpu_custom_call.1} parent=5 // pred_check
        _
      $region10: #{tpu_custom_call.1} parent=5 // pred_check_branch
        %233 = sbr.rel (%p230) target = $region12
      $region11: #{tpu_custom_call.1} parent=5 // pred_region
        %s234 = ssub.s32 %s27, 1
        // Predicated region
        $region13: #{tpu_custom_call.1} parent=11 // pred_check
          %p235 = pneg %p126
        $region14: #{tpu_custom_call.1} parent=11 // pred_check_branch
          %237 = sbr.rel (%p235) target = $region16
        $region15: #{tpu_custom_call.1} parent=11 // pred_region
          %239 = vsyncadd [#allocation9], 0
          %s240 = sshll.u32 %s3, 4
          %s241 = int_to_ptr.hbm [resolvable:$true] %s240
          %s242 = sshll.u32 [#allocation8], 4
          %s243 = int_to_ptr.vmem [resolvable:$true] %s242
          %248 = dma.hbm_to_vmem [thread:$0]  %s241, 1024, %s243, [#allocation9], 512, 512, 32
        $region16: #{tpu_custom_call.1} parent=11 // pred_fallthru
          _
        // Predicated region
        $region17: #{tpu_custom_call.1} parent=11 // pred_check
          %p249 = pneg %p147
        $region18: #{tpu_custom_call.1} parent=11 // pred_check_branch
          %251 = sbr.rel (%p249) target = $region20
        $region19: #{tpu_custom_call.1} parent=11 // pred_region
          %253 = vsyncadd [#allocation9], 0
          %s254 = sshll.u32 %s4, 4
          %s255 = int_to_ptr.hbm [resolvable:$true] %s254
          %s256 = sshll.u32 [#allocation10], 4
          %s257 = int_to_ptr.vmem [resolvable:$true] %s256
          %262 = dma.hbm_to_vmem [thread:$0]  %s255, 8192, %s257, [#allocation9], 512, 512, 32
        $region20: #{tpu_custom_call.1} parent=11 // pred_fallthru
          _
        // Predicated region
        $region21: #{tpu_custom_call.1} parent=11 // pred_check
          %p263 = pneg %p168
        $region22: #{tpu_custom_call.1} parent=11 // pred_check_branch
          %265 = sbr.rel (%p263) target = $region24
        $region23: #{tpu_custom_call.1} parent=11 // pred_region
          _
        $region24: #{tpu_custom_call.1} parent=11 // pred_fallthru
          _
      $region12: #{tpu_custom_call.1} parent=5 // pred_fallthru
        _
      %p266 = scmp.lt.s32.totalorder %s27, 2
      // Predicated region
      $region25: #{tpu_custom_call.1} parent=5 // pred_check
        %p267 = pneg %p266
      $region26: #{tpu_custom_call.1} parent=5 // pred_check_branch
        %269 = sbr.rel (%p267) target = $region28
      $region27: #{tpu_custom_call.1} parent=5 // pred_region
        // Predicated region
        $region29: #{tpu_custom_call.1} parent=27 // pred_check
          %p270 = pneg %p47
        $region30: #{tpu_custom_call.1} parent=27 // pred_check_branch
          %272 = sbr.rel (%p270) target = $region32
        $region31: #{tpu_custom_call.1} parent=27 // pred_region
          %s273 = sand.u32 %s37, 1
          %s274 = scalar_lea.sflag [#allocation3], %s273
          %s275 = sand.u32 %s37, 1
          %s276 = smul.addr %s275, 8
          %s277 = scalar_lea.vmem [#allocation2], %s276
          %279 = vsyncadd %s274, 0
          %s280 = smul.addr %s27, 8
          %s281 = scalar_lea.hbm %s0, %s280
          %s283 = sshll.u32 %s281, 4
          %s284 = int_to_ptr.hbm [resolvable:$true] %s283
          %s285 = sshll.u32 %s277, 4
          %s286 = int_to_ptr.vmem [resolvable:$true] %s285
          %288 = dma.hbm_to_vmem [thread:$0]  %s284, 128, %s286, %s274
        $region32: #{tpu_custom_call.1} parent=27 // pred_fallthru
          _
        // Predicated region
        $region33: #{tpu_custom_call.1} parent=27 // pred_check
          %p289 = pneg %p73
        $region34: #{tpu_custom_call.1} parent=27 // pred_check_branch
          %291 = sbr.rel (%p289) target = $region36
        $region35: #{tpu_custom_call.1} parent=27 // pred_region
          %s292 = sand.u32 %s27, 1
          %s293 = scalar_lea.sflag [#allocation6], %s292
          %s294 = sand.u32 %s63, 1
          %s295 = smul.addr %s294, 8
          %s296 = scalar_lea.vmem [#allocation5], %s295
          %298 = vsyncadd %s293, 0
          %s299 = smul.addr %s27, 8
          %s300 = scalar_lea.hbm %s1, %s299
          %s302 = sshll.u32 %s300, 4
          %s303 = int_to_ptr.hbm [resolvable:$true] %s302
          %s304 = sshll.u32 %s296, 4
          %s305 = int_to_ptr.vmem [resolvable:$true] %s304
          %307 = dma.hbm_to_vmem [thread:$0]  %s303, 128, %s305, %s293
        $region36: #{tpu_custom_call.1} parent=27 // pred_fallthru
          _
        // Predicated region
        $region37: #{tpu_custom_call.1} parent=27 // pred_check
          %p308 = pneg %p99
        $region38: #{tpu_custom_call.1} parent=27 // pred_check_branch
          %310 = sbr.rel (%p308) target = $region40
        $region39: #{tpu_custom_call.1} parent=27 // pred_region
          %s311 = sand.u32 %s27, 1
          %s312 = scalar_lea.sflag [#allocation6], %s311
          %s313 = sand.u32 %s89, 1
          %s314 = smul.addr %s313, 8
          %s315 = scalar_lea.vmem [#allocation7], %s314
          %317 = vsyncadd %s312, 0
          %s318 = smul.addr %s27, 8
          %s319 = scalar_lea.hbm %s2, %s318
          %s321 = sshll.u32 %s319, 4
          %s322 = int_to_ptr.hbm [resolvable:$true] %s321
          %s323 = sshll.u32 %s315, 4
          %s324 = int_to_ptr.vmem [resolvable:$true] %s323
          %326 = dma.hbm_to_vmem [thread:$0]  %s322, 128, %s324, %s312
        $region40: #{tpu_custom_call.1} parent=27 // pred_fallthru
          _
      $region28: #{tpu_custom_call.1} parent=5 // pred_fallthru
        _
      %p327 = scmp.le.s32.totalorder 1, %s27
      %p328 = scmp.lt.s32.totalorder %s27, 3
      %p329 = pnand %p327, %p328
      %p330 = pneg %p329
      // Predicated region
      $region41: #{tpu_custom_call.1} parent=5 // pred_check
        _
      $region42: #{tpu_custom_call.1} parent=5 // pred_check_branch
        %332 = sbr.rel (%p329) target = $region44
      $region43: #{tpu_custom_call.1} parent=5 // pred_region
        %s333 = ssub.s32 %s27, 1
        %s334 = sand.u32 %s40, 1
        %s335 = scalar_lea.sflag [#allocation3], %s334
        %s336 = sand.u32 %s40, 1
        %s337 = smul.addr %s336, 8
        %s338 = scalar_lea.vmem [#allocation2], %s337
        // Predicated region
        $region45: #{tpu_custom_call.1} parent=43 // pred_check
          %p339 = pneg %p53
        $region46: #{tpu_custom_call.1} parent=43 // pred_check_branch
          %341 = sbr.rel (%p339) target = $region48
        $region47: #{tpu_custom_call.1} parent=43 // pred_region
          %343 = dma.done %s335, 128
        $region48: #{tpu_custom_call.1} parent=43 // pred_fallthru
          _
        %s344 = sand.u32 %s32, 1
        %s345 = scalar_lea.sflag [#allocation6], %s344
        %s346 = sand.u32 %s66, 1
        %s347 = smul.addr %s346, 8
        %s348 = scalar_lea.vmem [#allocation5], %s347
        // Predicated region
        $region49: #{tpu_custom_call.1} parent=43 // pred_check
          %p349 = pneg %p79
        $region50: #{tpu_custom_call.1} parent=43 // pred_check_branch
          %351 = sbr.rel (%p349) target = $region52
        $region51: #{tpu_custom_call.1} parent=43 // pred_region
          %353 = dma.done %s345, 128
        $region52: #{tpu_custom_call.1} parent=43 // pred_fallthru
          _
        %s354 = sand.u32 %s32, 1
        %s355 = scalar_lea.sflag [#allocation6], %s354
        %s356 = sand.u32 %s92, 1
        %s357 = smul.addr %s356, 8
        %s358 = scalar_lea.vmem [#allocation7], %s357
        // Predicated region
        $region53: #{tpu_custom_call.1} parent=43 // pred_check
          %p359 = pneg %p105
        $region54: #{tpu_custom_call.1} parent=43 // pred_check_branch
          %361 = sbr.rel (%p359) target = $region56
        $region55: #{tpu_custom_call.1} parent=43 // pred_region
          %363 = dma.done %s355, 128
        $region56: #{tpu_custom_call.1} parent=43 // pred_fallthru
          _
        // Predicated region
        $region57: #{tpu_custom_call.1} parent=43 // pred_check
          %p364 = pneg %p126
        $region58: #{tpu_custom_call.1} parent=43 // pred_check_branch
          %366 = sbr.rel (%p364) target = $region60
        $region59: #{tpu_custom_call.1} parent=43 // pred_region
          %368 = dma.done [#allocation9], 1024
        $region60: #{tpu_custom_call.1} parent=43 // pred_fallthru
          _
        // Predicated region
        $region61: #{tpu_custom_call.1} parent=43 // pred_check
          %p369 = pneg %p147
        $region62: #{tpu_custom_call.1} parent=43 // pred_check_branch
          %371 = sbr.rel (%p369) target = $region64
        $region63: #{tpu_custom_call.1} parent=43 // pred_region
          %373 = dma.done [#allocation9], 8192
        $region64: #{tpu_custom_call.1} parent=43 // pred_fallthru
          _
        %s374 = sand.u32 %s40, 1
        %s375 = scalar_lea.sflag [#allocation3], %s374
        %s376 = sand.u32 %s40, 1
        %s377 = smul.addr %s376, 8
        %s378 = scalar_lea.vmem [#allocation2], %s377
        %p379 = pneg %p53
        %p380 = pneg %p50
        %s381 = sand.u32 %s32, 1
        %s382 = scalar_lea.sflag [#allocation6], %s381
        %s383 = sand.u32 %s66, 1
        %s384 = smul.addr %s383, 8
        %s385 = scalar_lea.vmem [#allocation5], %s384
        %p386 = pneg %p79
        %p387 = pneg %p76
        %s388 = sand.u32 %s32, 1
        %s389 = scalar_lea.sflag [#allocation6], %s388
        %s390 = sand.u32 %s92, 1
        %s391 = smul.addr %s390, 8
        %s392 = scalar_lea.vmem [#allocation7], %s391
        %p393 = pneg %p105
        %p394 = pneg %p102
        %p395 = pneg %p126
        %p396 = pneg %p123
        %p397 = pneg %p147
        %p398 = pneg %p144
        %p399 = pneg %p168
        %p400 = pneg %p165
        %p401 = pneg %p194
        %p402 = pneg %p191
        %s403 = sand.u32 %s181, 1
        %s404 = scalar_lea.sflag [#allocation4], %s403
        %s405 = sand.u32 %s181, 1
        %s406 = smul.addr %s405, 8
        %s407 = scalar_lea.vmem [#allocation11], %s406
        %p408 = pneg %p220
        %p409 = pneg %p217
        %s410 = sand.u32 %s207, 1
        %s411 = scalar_lea.sflag [#allocation13], %s410
        %s412 = sand.u32 %s207, 1
        %s413 = smul.addr %s412, 8
        %s414 = scalar_lea.vmem [#allocation12], %s413
        %v415 = vld [vmem:[%s338] sm:$0xff]
        %v416 = vld [vmem:[#allocation8] sm:$0xff]
        %v417 = vld [vmem:[#allocation8 + $0x8] sm:$0xff]
        %v418 = vld [vmem:[#allocation8 + $0x10] sm:$0xff]
        %v419 = vld [vmem:[#allocation8 + $0x18] sm:$0xff]
        %v420 = vld [vmem:[#allocation8 + $0x20] sm:$0xff]
        %v421 = vld [vmem:[#allocation8 + $0x28] sm:$0xff]
        %v422 = vld [vmem:[#allocation8 + $0x30] sm:$0xff]
        %v423 = vld [vmem:[#allocation8 + $0x38] sm:$0xff]
        %v424 = vld [vmem:[%s348] sm:$0xff]
        %v425 = vld [vmem:[#allocation10] sm:$0xff]
        %v426 = vld [vmem:[#allocation10 + $0x8] sm:$0xff]
        %v427 = vld [vmem:[#allocation10 + $0x10] sm:$0xff]
        %v428 = vld [vmem:[#allocation10 + $0x18] sm:$0xff]
        %v429 = vld [vmem:[#allocation10 + $0x20] sm:$0xff]
        %v430 = vld [vmem:[#allocation10 + $0x28] sm:$0xff]
        %v431 = vld [vmem:[#allocation10 + $0x30] sm:$0xff]
        %v432 = vld [vmem:[#allocation10 + $0x38] sm:$0xff]
        %v433 = vld [vmem:[#allocation10 + $0x40] sm:$0xff]
        %v434 = vld [vmem:[#allocation10 + $0x48] sm:$0xff]
        %v435 = vld [vmem:[#allocation10 + $0x50] sm:$0xff]
        %v436 = vld [vmem:[#allocation10 + $0x58] sm:$0xff]
        %v437 = vld [vmem:[#allocation10 + $0x60] sm:$0xff]
        %v438 = vld [vmem:[#allocation10 + $0x68] sm:$0xff]
        %v439 = vld [vmem:[#allocation10 + $0x70] sm:$0xff]
        %v440 = vld [vmem:[#allocation10 + $0x78] sm:$0xff]
        %v441 = vld [vmem:[#allocation10 + $0x80] sm:$0xff]
        %v442 = vld [vmem:[#allocation10 + $0x88] sm:$0xff]
        %v443 = vld [vmem:[#allocation10 + $0x90] sm:$0xff]
        %v444 = vld [vmem:[#allocation10 + $0x98] sm:$0xff]
        %v445 = vld [vmem:[#allocation10 + $0xa0] sm:$0xff]
        %v446 = vld [vmem:[#allocation10 + $0xa8] sm:$0xff]
        %v447 = vld [vmem:[#allocation10 + $0xb0] sm:$0xff]
        %v448 = vld [vmem:[#allocation10 + $0xb8] sm:$0xff]
        %v449 = vld [vmem:[#allocation10 + $0xc0] sm:$0xff]
        %v450 = vld [vmem:[#allocation10 + $0xc8] sm:$0xff]
        %v451 = vld [vmem:[#allocation10 + $0xd0] sm:$0xff]
        %v452 = vld [vmem:[#allocation10 + $0xd8] sm:$0xff]
        %v453 = vld [vmem:[#allocation10 + $0xe0] sm:$0xff]
        %v454 = vld [vmem:[#allocation10 + $0xe8] sm:$0xff]
        %v455 = vld [vmem:[#allocation10 + $0xf0] sm:$0xff]
        %v456 = vld [vmem:[#allocation10 + $0xf8] sm:$0xff]
        %v457 = vld [vmem:[#allocation10 + $0x100] sm:$0xff]
        %v458 = vld [vmem:[#allocation10 + $0x108] sm:$0xff]
        %v459 = vld [vmem:[#allocation10 + $0x110] sm:$0xff]
        %v460 = vld [vmem:[#allocation10 + $0x118] sm:$0xff]
        %v461 = vld [vmem:[#allocation10 + $0x120] sm:$0xff]
        %v462 = vld [vmem:[#allocation10 + $0x128] sm:$0xff]
        %v463 = vld [vmem:[#allocation10 + $0x130] sm:$0xff]
        %v464 = vld [vmem:[#allocation10 + $0x138] sm:$0xff]
        %v465 = vld [vmem:[#allocation10 + $0x140] sm:$0xff]
        %v466 = vld [vmem:[#allocation10 + $0x148] sm:$0xff]
        %v467 = vld [vmem:[#allocation10 + $0x150] sm:$0xff]
        %v468 = vld [vmem:[#allocation10 + $0x158] sm:$0xff]
        %v469 = vld [vmem:[#allocation10 + $0x160] sm:$0xff]
        %v470 = vld [vmem:[#allocation10 + $0x168] sm:$0xff]
        %v471 = vld [vmem:[#allocation10 + $0x170] sm:$0xff]
        %v472 = vld [vmem:[#allocation10 + $0x178] sm:$0xff]
        %v473 = vld [vmem:[#allocation10 + $0x180] sm:$0xff]
        %v474 = vld [vmem:[#allocation10 + $0x188] sm:$0xff]
        %v475 = vld [vmem:[#allocation10 + $0x190] sm:$0xff]
        %v476 = vld [vmem:[#allocation10 + $0x198] sm:$0xff]
        %v477 = vld [vmem:[#allocation10 + $0x1a0] sm:$0xff]
        %v478 = vld [vmem:[#allocation10 + $0x1a8] sm:$0xff]
        %v479 = vld [vmem:[#allocation10 + $0x1b0] sm:$0xff]
        %v480 = vld [vmem:[#allocation10 + $0x1b8] sm:$0xff]
        %v481 = vld [vmem:[#allocation10 + $0x1c0] sm:$0xff]
        %v482 = vld [vmem:[#allocation10 + $0x1c8] sm:$0xff]
        %v483 = vld [vmem:[#allocation10 + $0x1d0] sm:$0xff]
        %v484 = vld [vmem:[#allocation10 + $0x1d8] sm:$0xff]
        %v485 = vld [vmem:[#allocation10 + $0x1e0] sm:$0xff]
        %v486 = vld [vmem:[#allocation10 + $0x1e8] sm:$0xff]
        %v487 = vld [vmem:[#allocation10 + $0x1f0] sm:$0xff]
        %v488 = vld [vmem:[#allocation10 + $0x1f8] sm:$0xff]
        %489 = vmatpush.msra.mxu0 %v485
        %490 = vmatpush.msra.mxu0 %v481
        %491 = vmatpush.msra.mxu0 %v477
        %492 = vmatpush.msra.mxu0 %v473
        %493 = vmatpush.msra.mxu0 %v469
        %494 = vmatpush.msra.mxu0 %v465
        %495 = vmatpush.msra.mxu0 %v461
        %496 = vmatpush.msra.mxu0 %v457
        %497 = vmatpush.msra.mxu0 %v453
        %498 = vmatpush.msra.mxu0 %v449
        %499 = vmatpush.msra.mxu0 %v445
        %500 = vmatpush.msra.mxu0 %v441
        %501 = vmatpush.msra.mxu0 %v437
        %502 = vmatpush.msra.mxu0 %v433
        %503 = vmatpush.msra.mxu0 %v429
        %504 = vmatpush.msra.mxu0 %v425
        %505 = vmatmul.f32.gmra.mxu0 %v424
        %v506 = vpop.f32.mrf.mxu0
        %v507 = vadd.f32 0.0, %v506
        %508 = vdwg.mxu0
        %509 = vmatpush.msra.mxu0 %v486
        %510 = vmatpush.msra.mxu0 %v482
        %511 = vmatpush.msra.mxu0 %v478
        %512 = vmatpush.msra.mxu0 %v474
        %513 = vmatpush.msra.mxu0 %v470
        %514 = vmatpush.msra.mxu0 %v466
        %515 = vmatpush.msra.mxu0 %v462
        %516 = vmatpush.msra.mxu0 %v458
        %517 = vmatpush.msra.mxu0 %v454
        %518 = vmatpush.msra.mxu0 %v450
        %519 = vmatpush.msra.mxu0 %v446
        %520 = vmatpush.msra.mxu0 %v442
        %521 = vmatpush.msra.mxu0 %v438
        %522 = vmatpush.msra.mxu0 %v434
        %523 = vmatpush.msra.mxu0 %v430
        %524 = vmatpush.msra.mxu0 %v426
        %525 = vmatmul.f32.gmra.mxu0 %v424
        %v526 = vpop.f32.mrf.mxu0
        %v527 = vadd.f32 0.0, %v526
        %528 = vdwg.mxu0
        %529 = vmatpush.msra.mxu0 %v487
        %530 = vmatpush.msra.mxu0 %v483
        %531 = vmatpush.msra.mxu0 %v479
        %532 = vmatpush.msra.mxu0 %v475
        %533 = vmatpush.msra.mxu0 %v471
        %534 = vmatpush.msra.mxu0 %v467
        %535 = vmatpush.msra.mxu0 %v463
        %536 = vmatpush.msra.mxu0 %v459
        %537 = vmatpush.msra.mxu0 %v455
        %538 = vmatpush.msra.mxu0 %v451
        %539 = vmatpush.msra.mxu0 %v447
        %540 = vmatpush.msra.mxu0 %v443
        %541 = vmatpush.msra.mxu0 %v439
        %542 = vmatpush.msra.mxu0 %v435
        %543 = vmatpush.msra.mxu0 %v431
        %544 = vmatpush.msra.mxu0 %v427
        %545 = vmatmul.f32.gmra.mxu0 %v424
        %v546 = vpop.f32.mrf.mxu0
        %v547 = vadd.f32 0.0, %v546
        %548 = vdwg.mxu0
        %549 = vmatpush.msra.mxu0 %v488
        %550 = vmatpush.msra.mxu0 %v484
        %551 = vmatpush.msra.mxu0 %v480
        %552 = vmatpush.msra.mxu0 %v476
        %553 = vmatpush.msra.mxu0 %v472
        %554 = vmatpush.msra.mxu0 %v468
        %555 = vmatpush.msra.mxu0 %v464
        %556 = vmatpush.msra.mxu0 %v460
        %557 = vmatpush.msra.mxu0 %v456
        %558 = vmatpush.msra.mxu0 %v452
        %559 = vmatpush.msra.mxu0 %v448
        %560 = vmatpush.msra.mxu0 %v444
        %561 = vmatpush.msra.mxu0 %v440
        %562 = vmatpush.msra.mxu0 %v436
        %563 = vmatpush.msra.mxu0 %v432
        %564 = vmatpush.msra.mxu0 %v428
        %565 = vmatmul.f32.gmra.mxu0 %v424
        %v566 = vpop.f32.mrf.mxu0
        %v567 = vadd.f32 0.0, %v566
        %568 = vdwg.mxu0
        %vm569 = vcmask 130048
        %v571 = vsel %vm569, %v415, 0
        %573 = vmatpush.msra.mxu0 0.0
        %574 = vmatpush.msra.mxu0 0.0
        %575 = vmatpush.msra.mxu0 0.0
        %576 = vmatpush.msra.mxu0 0.0
        %577 = vmatpush.msra.mxu0 0.0
        %578 = vmatpush.msra.mxu0 0.0
        %579 = vmatpush.msra.mxu0 0.0
        %580 = vmatpush.msra.mxu0 0.0
        %581 = vmatpush.msra.mxu0 0.0
        %582 = vmatpush.msra.mxu0 0.0
        %583 = vmatpush.msra.mxu0 0.0
        %584 = vmatpush.msra.mxu0 0.0
        %585 = vmatpush.msra.mxu0 0.0
        %586 = vmatpush.msra.mxu0 0.0
        %587 = vmatpush.msra.mxu0 %v420
        %588 = vmatpush.msra.mxu0 %v416
        %589 = vmatmul.f32.gmra.mxu0 %v571
        %v590 = vpop.f32.mrf.mxu0
        %v591 = vadd.f32 %v507, %v590
        %592 = vdwg.mxu0
        %593 = vmatpush.msra.mxu0 0.0
        %594 = vmatpush.msra.mxu0 0.0
        %595 = vmatpush.msra.mxu0 0.0
        %596 = vmatpush.msra.mxu0 0.0
        %597 = vmatpush.msra.mxu0 0.0
        %598 = vmatpush.msra.mxu0 0.0
        %599 = vmatpush.msra.mxu0 0.0
        %600 = vmatpush.msra.mxu0 0.0
        %601 = vmatpush.msra.mxu0 0.0
        %602 = vmatpush.msra.mxu0 0.0
        %603 = vmatpush.msra.mxu0 0.0
        %604 = vmatpush.msra.mxu0 0.0
        %605 = vmatpush.msra.mxu0 0.0
        %606 = vmatpush.msra.mxu0 0.0
        %607 = vmatpush.msra.mxu0 %v421
        %608 = vmatpush.msra.mxu0 %v417
        %609 = vmatmul.f32.gmra.mxu0 %v571
        %v610 = vpop.f32.mrf.mxu0
        %v611 = vadd.f32 %v527, %v610
        %612 = vdwg.mxu0
        %613 = vmatpush.msra.mxu0 0.0
        %614 = vmatpush.msra.mxu0 0.0
        %615 = vmatpush.msra.mxu0 0.0
        %616 = vmatpush.msra.mxu0 0.0
        %617 = vmatpush.msra.mxu0 0.0
        %618 = vmatpush.msra.mxu0 0.0
        %619 = vmatpush.msra.mxu0 0.0
        %620 = vmatpush.msra.mxu0 0.0
        %621 = vmatpush.msra.mxu0 0.0
        %622 = vmatpush.msra.mxu0 0.0
        %623 = vmatpush.msra.mxu0 0.0
        %624 = vmatpush.msra.mxu0 0.0
        %625 = vmatpush.msra.mxu0 0.0
        %626 = vmatpush.msra.mxu0 0.0
        %627 = vmatpush.msra.mxu0 %v422
        %628 = vmatpush.msra.mxu0 %v418
        %629 = vmatmul.f32.gmra.mxu0 %v571
        %v630 = vpop.f32.mrf.mxu0
        %v631 = vadd.f32 %v547, %v630
        %632 = vdwg.mxu0
        %633 = vmatpush.msra.mxu0 0.0
        %634 = vmatpush.msra.mxu0 0.0
        %635 = vmatpush.msra.mxu0 0.0
        %636 = vmatpush.msra.mxu0 0.0
        %637 = vmatpush.msra.mxu0 0.0
        %638 = vmatpush.msra.mxu0 0.0
        %639 = vmatpush.msra.mxu0 0.0
        %640 = vmatpush.msra.mxu0 0.0
        %641 = vmatpush.msra.mxu0 0.0
        %642 = vmatpush.msra.mxu0 0.0
        %643 = vmatpush.msra.mxu0 0.0
        %644 = vmatpush.msra.mxu0 0.0
        %645 = vmatpush.msra.mxu0 0.0
        %646 = vmatpush.msra.mxu0 0.0
        %647 = vmatpush.msra.mxu0 %v423
        %648 = vmatpush.msra.mxu0 %v419
        %649 = vmatmul.f32.gmra.mxu0 %v571
        %v650 = vpop.f32.mrf.mxu0
        %v651 = vadd.f32 %v567, %v650
        %652 = vdwg.mxu0
        %v653 = vld [vmem:[%s5] sm:$0xf]
        %v655 = vperm.slane %v653, 0
        %v656 = vperm.slane %v653, 1
        %v657 = vperm.slane %v653, 2
        %v658 = vperm.slane %v653, 3
        %v663 = vadd.f32 %v591, %v655
        %v664 = vadd.f32 %v611, %v656
        %v665 = vadd.f32 %v631, %v657
        %v666 = vadd.f32 %v651, %v658
        %v667 = vxor.u32 %v663, 2147483648
        %v668 = vxor.u32 %v664, 2147483648
        %v669 = vxor.u32 %v665, 2147483648
        %v670 = vxor.u32 %v666, 2147483648
        %v671 = vmul.f32 %v667, 1.442695
        %v672 = vpow.pop %v671
        %v673 = vmul.f32 %v668, 1.442695
        %v674 = vpow.pop %v673
        %v675 = vmul.f32 %v669, 1.442695
        %v676 = vpow.pop %v675
        %v677 = vmul.f32 %v670, 1.442695
        %v678 = vpow.pop %v677
        %v679 = vadd.f32 %v672, 1.0
        %v680 = vadd.f32 %v674, 1.0
        %v681 = vadd.f32 %v676, 1.0
        %v682 = vadd.f32 %v678, 1.0
        %v683 = vrcp.pop %v679
        %v684 = vmul.f32 %v679, %v683
        %v685 = vsub.f32 1.0, %v684
        %v686 = vmul.f32 %v683, %v685
        %v687 = vadd.f32 %v683, %v686
        %vm688 = vweird.f32 %v679
        %vm689 = vweird.f32 %v683
        %vm690 = vmor %vm688, %vm689
        %v691 = vsel %vm690, %v683, %v687
        %v692 = vand.u32 2147483647, %v679
        %vm693 = vcmp.eq.f32.partialorder %v692, 8.507059e+37
        %v694 = vand.u32 %v679, 2147483648
        %v695 = vor.u32 1.1754944e-38, %v694
        %v696 = vsel %vm693, %v695, %v691
        %v697 = vmul.f32 1.0, %v696
        %v698 = vrcp.pop %v680
        %v699 = vmul.f32 %v680, %v698
        %v700 = vsub.f32 1.0, %v699
        %v701 = vmul.f32 %v698, %v700
        %v702 = vadd.f32 %v698, %v701
        %vm703 = vweird.f32 %v680
        %vm704 = vweird.f32 %v698
        %vm705 = vmor %vm703, %vm704
        %v706 = vsel %vm705, %v698, %v702
        %v707 = vand.u32 2147483647, %v680
        %vm708 = vcmp.eq.f32.partialorder %v707, 8.507059e+37
        %v709 = vand.u32 %v680, 2147483648
        %v710 = vor.u32 1.1754944e-38, %v709
        %v711 = vsel %vm708, %v710, %v706
        %v712 = vmul.f32 1.0, %v711
        %v713 = vrcp.pop %v681
        %v714 = vmul.f32 %v681, %v713
        %v715 = vsub.f32 1.0, %v714
        %v716 = vmul.f32 %v713, %v715
        %v717 = vadd.f32 %v713, %v716
        %vm718 = vweird.f32 %v681
        %vm719 = vweird.f32 %v713
        %vm720 = vmor %vm718, %vm719
        %v721 = vsel %vm720, %v713, %v717
        %v722 = vand.u32 2147483647, %v681
        %vm723 = vcmp.eq.f32.partialorder %v722, 8.507059e+37
        %v724 = vand.u32 %v681, 2147483648
        %v725 = vor.u32 1.1754944e-38, %v724
        %v726 = vsel %vm723, %v725, %v721
        %v727 = vmul.f32 1.0, %v726
        %v728 = vrcp.pop %v682
        %v729 = vmul.f32 %v682, %v728
        %v730 = vsub.f32 1.0, %v729
        %v731 = vmul.f32 %v728, %v730
        %v732 = vadd.f32 %v728, %v731
        %vm733 = vweird.f32 %v682
        %vm734 = vweird.f32 %v728
        %vm735 = vmor %vm733, %vm734
        %v736 = vsel %vm735, %v728, %v732
        %v737 = vand.u32 2147483647, %v682
        %vm738 = vcmp.eq.f32.partialorder %v737, 8.507059e+37
        %v739 = vand.u32 %v682, 2147483648
        %v740 = vor.u32 1.1754944e-38, %v739
        %v741 = vsel %vm738, %v740, %v736
        %v742 = vmul.f32 1.0, %v741
        %v743 = vld [vmem:[%s358] sm:$0xff]
        %v744 = vmul.f32 %v712, %v743
        %v745 = vadd.f32 %v744, %v727
        %v746 = vsub.f32 %v745, %v697
        %v747 = vxor.u32 %v746, 2147483648
        %v748 = vmul.f32 %v747, 1.442695
        %v749 = vpow.pop %v748
        %v750 = vadd.f32 %v749, 1.0
        %v751 = vrcp.pop %v750
        %v752 = vmul.f32 %v750, %v751
        %v753 = vsub.f32 1.0, %v752
        %v754 = vmul.f32 %v751, %v753
        %v755 = vadd.f32 %v751, %v754
        %vm756 = vweird.f32 %v750
        %vm757 = vweird.f32 %v751
        %vm758 = vmor %vm756, %vm757
        %v759 = vsel %vm758, %v751, %v755
        %v760 = vand.u32 2147483647, %v750
        %vm761 = vcmp.eq.f32.partialorder %v760, 8.507059e+37
        %v762 = vand.u32 %v750, 2147483648
        %v763 = vor.u32 1.1754944e-38, %v762
        %v764 = vsel %vm761, %v763, %v759
        %v765 = vmul.f32 1.0, %v764
        %v766 = vsub.f32 %v765, %v742
        %767 = vst [vmem:[%s407] sm:$0xff] %v766
        %768 = vst [vmem:[%s414] sm:$0xff] %v746
        %s769 = sand.u32 %s181, 1
        %s770 = scalar_lea.sflag [#allocation4], %s769
        %s771 = sand.u32 %s181, 1
        %s772 = smul.addr %s771, 8
        %s773 = scalar_lea.vmem [#allocation11], %s772
        %s774 = sand.u32 %s207, 1
        %s775 = scalar_lea.sflag [#allocation13], %s774
        %s776 = sand.u32 %s207, 1
        %s777 = smul.addr %s776, 8
        %s778 = scalar_lea.vmem [#allocation12], %s777
        // Predicated region
        $region65: #{tpu_custom_call.1} parent=43 // pred_check
          %p779 = pneg %p191
        $region66: #{tpu_custom_call.1} parent=43 // pred_check_branch
          %781 = sbr.rel (%p779) target = $region68
        $region67: #{tpu_custom_call.1} parent=43 // pred_region
          %783 = vsyncadd %s770, 0
          %s784 = smul.addr %s32, 8
          %s785 = scalar_lea.hbm %s6, %s784
          %s787 = sshll.u32 %s773, 4
          %s788 = int_to_ptr.vmem [resolvable:$true] %s787
          %s789 = sshll.u32 %s785, 4
          %s790 = int_to_ptr.hbm [resolvable:$true] %s789
          %792 = dma.vmem_to_hbm [thread:$0]  %s788, 128, %s790, %s770
        $region68: #{tpu_custom_call.1} parent=43 // pred_fallthru
          _
        // Predicated region
        $region69: #{tpu_custom_call.1} parent=43 // pred_check
          %p793 = pneg %p217
        $region70: #{tpu_custom_call.1} parent=43 // pred_check_branch
          %795 = sbr.rel (%p793) target = $region72
        $region71: #{tpu_custom_call.1} parent=43 // pred_region
          %797 = vsyncadd %s775, 0
          %s798 = smul.addr %s32, 8
          %s799 = scalar_lea.hbm %s7, %s798
          %s801 = sshll.u32 %s778, 4
          %s802 = int_to_ptr.vmem [resolvable:$true] %s801
          %s803 = sshll.u32 %s799, 4
          %s804 = int_to_ptr.hbm [resolvable:$true] %s803
          %806 = dma.vmem_to_hbm [thread:$0]  %s802, 128, %s804, %s775
        $region72: #{tpu_custom_call.1} parent=43 // pred_fallthru
          _
      $region44: #{tpu_custom_call.1} parent=5 // pred_fallthru
        _
      %p807 = scmp.le.s32.totalorder 2, %s27
      // Predicated region
      $region73: #{tpu_custom_call.1} parent=5 // pred_check
        %p808 = pneg %p807
      $region74: #{tpu_custom_call.1} parent=5 // pred_check_branch
        %810 = sbr.rel (%p808) target = $region76
      $region75: #{tpu_custom_call.1} parent=5 // pred_region
        %s811 = ssub.s32 %s27, 2
        // Predicated region
        $region77: #{tpu_custom_call.1} parent=75 // pred_check
          %p812 = pneg %p197
        $region78: #{tpu_custom_call.1} parent=75 // pred_check_branch
          %814 = sbr.rel (%p812) target = $region80
        $region79: #{tpu_custom_call.1} parent=75 // pred_region
          %s815 = sand.u32 %s182, 1
          %s816 = scalar_lea.sflag [#allocation4], %s815
          %s817 = sand.u32 %s182, 1
          %s818 = smul.addr %s817, 8
          %s819 = scalar_lea.vmem [#allocation11], %s818
          %821 = dma.done %s816, 128
        $region80: #{tpu_custom_call.1} parent=75 // pred_fallthru
          _
        // Predicated region
        $region81: #{tpu_custom_call.1} parent=75 // pred_check
          %p822 = pneg %p223
        $region82: #{tpu_custom_call.1} parent=75 // pred_check_branch
          %824 = sbr.rel (%p822) target = $region84
        $region83: #{tpu_custom_call.1} parent=75 // pred_region
          %s825 = sand.u32 %s208, 1
          %s826 = scalar_lea.sflag [#allocation13], %s825
          %s827 = sand.u32 %s208, 1
          %s828 = smul.addr %s827, 8
          %s829 = scalar_lea.vmem [#allocation12], %s828
          %831 = dma.done %s826, 128
        $region84: #{tpu_custom_call.1} parent=75 // pred_fallthru
          _
      $region76: #{tpu_custom_call.1} parent=5 // pred_fallthru
        _
    $region6: #{tpu_custom_call.1} parent=1 // loop_footer
      %s31 = sadd.s32 1, %s27
    $region7: #{tpu_custom_call.1} parent=1 // loop_footer_branch
      %26 = sbr.rel target = $region3
    $region8: #{tpu_custom_call.1} parent=1 // loop_exit
      _
    %832 = vsyncpa [#allocation3], 1
    %s833 = scalar_lea.sflag [#allocation3], 1
    %834 = vsyncpa %s833, 1
    %835 = vsyncpa [#allocation6], 1
    %s836 = scalar_lea.sflag [#allocation6], 1
    %837 = vsyncpa %s836, 1
    %838 = vsyncpa [#allocation9], 1
    %839 = vsyncpa [#allocation4], 1
    %s840 = scalar_lea.sflag [#allocation4], 1
    %841 = vsyncpa %s840, 1
    %842 = vsyncpa [#allocation13], 1
    %s843 = scalar_lea.sflag [#allocation13], 1
    %844 = vsyncpa %s843, 1

// kernel: tpu_custom_call.1
$region0: #{tpu_custom_call.1}
  #allocation0 [shape = 'u32[]', space=smem, size = 0x4, offset = 0x4, fixed_abs, tag = 'smem constant byte address 0x4 - core index']
  #allocation1 [shape = 'u32[72,128]{1,0:T(1,128)}', space=vmem, size = 0x9000, scoped, tag = 'internal scratch']
  %s0 = inlined_call_operand.hbm [shape: f32[16,16], index: 0, kind: input, shape index: {}]
  %s1 = inlined_call_operand.hbm [shape: f32[16,128], index: 1, kind: input, shape index: {}]
  %s2 = inlined_call_operand.hbm [shape: f32[16,128], index: 2, kind: input, shape index: {}]
  %s3 = inlined_call_operand.hbm [shape: f32[16,512], index: 3, kind: input, shape index: {}]
  %s4 = inlined_call_operand.hbm [shape: f32[128,512], index: 4, kind: input, shape index: {}]
  %s5 = inlined_call_operand.vmem [shape: f32[1,512], index: 5, kind: input, shape index: {}]
  %s6 = inlined_call_operand.hbm [shape: f32[16,128], index: 6, kind: output, shape index: {0}]
  %s7 = inlined_call_operand.hbm [shape: f32[16,128], index: 7, kind: output, shape index: {1}]
  %8 = xla_tuple %s6, %s7
  %s9 = sld [smem:[#allocation0]]
  $region85: #{tpu_custom_call.1} parent=0
    _
  %s11 = ssub.s32 1, %s9
  %s12 = scalar_select 0, %s11, %s9
  $region1: #{tpu_custom_call.1} parent=0
    #allocation2 [shape = 'u8[8192]{0}', space=vmem, size = 0x2000, scoped, tag = 'input window, operand 0']
    #allocation3 [shape = 's32[2]{0}', space=sflag, size = 0x8, scoped, tag = 'scoped memory for tpu_custom_call.1']
    #allocation4 [shape = 's32[2]{0}', space=sflag, size = 0x8, scoped, tag = 'scoped memory for tpu_custom_call.1']
    #allocation5 [shape = 'u8[8192]{0}', space=vmem, size = 0x2000, scoped, tag = 'input window, operand 1']
    #allocation6 [shape = 's32[2]{0}', space=sflag, size = 0x8, scoped, tag = 'scoped memory for tpu_custom_call.1']
    #allocation7 [shape = 'u8[8192]{0}', space=vmem, size = 0x2000, scoped, tag = 'input window, operand 2']
    #allocation8 [shape = 'u8[32768]{0}', space=vmem, size = 0x8000, scoped, tag = 'input window, operand 3, single buffered']
    #allocation9 [shape = 's32[1]{0}', space=sflag, size = 0x4, scoped, tag = 'scoped memory for tpu_custom_call.1']
    #allocation10 [shape = 'u8[262144]{0}', space=vmem, size = 0x40000, scoped, tag = 'input window, operand 4, single buffered']
    #allocation11 [shape = 'u8[8192]{0}', space=vmem, size = 0x2000, scoped, tag = 'output window, operand 0']
    #allocation12 [shape = 'u8[8192]{0}', space=vmem, size = 0x2000, scoped, tag = 'output window, operand 1']
    #allocation13 [shape = 's32[2]{0}', space=sflag, size = 0x8, scoped, tag = 'scoped memory for tpu_custom_call.1']
    %13 = vsyncpa [#allocation3], 0
    %s14 = scalar_lea.sflag [#allocation3], 1
    %15 = vsyncpa %s14, 0
    %16 = vsyncpa [#allocation6], 0
    %s17 = scalar_lea.sflag [#allocation6], 1
    %18 = vsyncpa %s17, 0
    %19 = vsyncpa [#allocation9], 0
    %20 = vsyncpa [#allocation4], 0
    %s21 = scalar_lea.sflag [#allocation4], 1
    %22 = vsyncpa %s21, 0
    %23 = vsyncpa [#allocation13], 0
    %s24 = scalar_lea.sflag [#allocation13], 1
    %25 = vsyncpa %s24, 0
    loop: start=0, step=1, limit=4
    $region2: #{tpu_custom_call.1} parent=1 // loop_pre_header
      _
    $region3: #{tpu_custom_call.1} parent=1 // loop_header
      %s27 = sphi 0, %s31
      %p28 = scmp.ge.s32.totalorder %s27, 4
      %s37 = sphi 0, %s39
      %s40 = sphi 0, %s37
      %s41 = sphi 0, %s40
      %s57 = sphi 0, %s41
      %s63 = sphi 0, %s65
      %s66 = sphi 0, %s63
      %s67 = sphi 0, %s66
      %s83 = sphi 0, %s67
      %s89 = sphi 0, %s91
      %s92 = sphi 0, %s89
      %s93 = sphi 0, %s92
      %s109 = sphi 0, %s93
      %s113 = sphi 0, %s113
      %s115 = sphi 0, %s113
      %s116 = sphi 0, %s115
      %s130 = sphi 0, %s116
      %s134 = sphi 0, %s134
      %s136 = sphi 0, %s134
      %s137 = sphi 0, %s136
      %s151 = sphi 0, %s137
      %s155 = sphi 0, %s155
      %s157 = sphi 0, %s155
      %s158 = sphi 0, %s157
      %s172 = sphi 0, %s158
      %s178 = sphi 0, %s180
      %s181 = sphi 0, %s178
      %s182 = sphi 0, %s181
      %s198 = sphi 0, %s182
      %s204 = sphi 0, %s206
      %s207 = sphi 0, %s204
      %s208 = sphi 0, %s207
      %s224 = sphi 0, %s208
    $region4: #{tpu_custom_call.1} parent=1 // loop_header_branch
      %30 = sbr.rel (%p28) target = $region8
    $region5: #{tpu_custom_call.1} parent=1 // loop_body
      %s32 = ssub.s32 %s27, 1
      %s33 = ssub.s32 %s27, 2
      %s34 = sadd.s32 %s27, 1
      %s35 = ssub.s32 %s27, %s34
      %p36 = scmp.eq.s32.totalorder %s35, 0
      %s38 = sadd.s32 %s37, 1
      %s39 = scalar_select %p36, %s37, %s38
      %p42 = pneg %p36
      %p43 = scmp.eq.s32.totalorder %s27, 1
      %p44 = por %p42, %p43
      %p45 = scmp.ne.s32.totalorder %s37, %s40
      %p46 = scmp.eq.s32.totalorder %s27, 0
      %p47 = por %p45, %p46
      %p48 = scmp.ne.s32.totalorder %s37, %s40
      %p49 = scmp.eq.s32.totalorder %s32, 1
      %p50 = por %p48, %p49
      %p51 = scmp.ne.s32.totalorder %s40, %s41
      %p52 = scmp.eq.s32.totalorder %s32, 0
      %p53 = por %p51, %p52
      %p54 = scmp.ne.s32.totalorder %s40, %s41
      %p55 = scmp.eq.s32.totalorder %s33, 1
      %p56 = por %p54, %p55
      %p58 = scmp.ne.s32.totalorder %s41, %s57
      %p59 = scmp.eq.s32.totalorder %s33, 0
      %p60 = por %p58, %p59
      %s61 = ssub.s32 %s27, %s34
      %p62 = scmp.eq.s32.totalorder %s61, 0
      %s64 = sadd.s32 %s63, 1
      %s65 = scalar_select %p62, %s63, %s64
      %p68 = pneg %p62
      %p69 = scmp.eq.s32.totalorder %s27, 1
      %p70 = por %p68, %p69
      %p71 = scmp.ne.s32.totalorder %s63, %s66
      %p72 = scmp.eq.s32.totalorder %s27, 0
      %p73 = por %p71, %p72
      %p74 = scmp.ne.s32.totalorder %s63, %s66
      %p75 = scmp.eq.s32.totalorder %s32, 1
      %p76 = por %p74, %p75
      %p77 = scmp.ne.s32.totalorder %s66, %s67
      %p78 = scmp.eq.s32.totalorder %s32, 0
      %p79 = por %p77, %p78
      %p80 = scmp.ne.s32.totalorder %s66, %s67
      %p81 = scmp.eq.s32.totalorder %s33, 1
      %p82 = por %p80, %p81
      %p84 = scmp.ne.s32.totalorder %s67, %s83
      %p85 = scmp.eq.s32.totalorder %s33, 0
      %p86 = por %p84, %p85
      %s87 = ssub.s32 %s27, %s34
      %p88 = scmp.eq.s32.totalorder %s87, 0
      %s90 = sadd.s32 %s89, 1
      %s91 = scalar_select %p88, %s89, %s90
      %p94 = pneg %p88
      %p95 = scmp.eq.s32.totalorder %s27, 1
      %p96 = por %p94, %p95
      %p97 = scmp.ne.s32.totalorder %s89, %s92
      %p98 = scmp.eq.s32.totalorder %s27, 0
      %p99 = por %p97, %p98
      %p100 = scmp.ne.s32.totalorder %s89, %s92
      %p101 = scmp.eq.s32.totalorder %s32, 1
      %p102 = por %p100, %p101
      %p103 = scmp.ne.s32.totalorder %s92, %s93
      %p104 = scmp.eq.s32.totalorder %s32, 0
      %p105 = por %p103, %p104
      %p106 = scmp.ne.s32.totalorder %s92, %s93
      %p107 = scmp.eq.s32.totalorder %s33, 1
      %p108 = por %p106, %p107
      %p110 = scmp.ne.s32.totalorder %s93, %s109
      %p111 = scmp.eq.s32.totalorder %s33, 0
      %p112 = por %p110, %p111
      %s114 = sadd.s32 %s113, 1
      %p117 = scmp.eq.s32.totalorder %s27, 1
      %p118 = scmp.ne.s32.totalorder %s113, %s115
      %p119 = scmp.eq.s32.totalorder %s27, 0
      %p120 = por %p118, %p119
      %p121 = scmp.ne.s32.totalorder %s113, %s115
      %p122 = scmp.eq.s32.totalorder %s32, 1
      %p123 = por %p121, %p122
      %p124 = scmp.ne.s32.totalorder %s115, %s116
      %p125 = scmp.eq.s32.totalorder %s32, 0
      %p126 = por %p124, %p125
      %p127 = scmp.ne.s32.totalorder %s115, %s116
      %p128 = scmp.eq.s32.totalorder %s33, 1
      %p129 = por %p127, %p128
      %p131 = scmp.ne.s32.totalorder %s116, %s130
      %p132 = scmp.eq.s32.totalorder %s33, 0
      %p133 = por %p131, %p132
      %s135 = sadd.s32 %s134, 1
      %p138 = scmp.eq.s32.totalorder %s27, 1
      %p139 = scmp.ne.s32.totalorder %s134, %s136
      %p140 = scmp.eq.s32.totalorder %s27, 0
      %p141 = por %p139, %p140
      %p142 = scmp.ne.s32.totalorder %s134, %s136
      %p143 = scmp.eq.s32.totalorder %s32, 1
      %p144 = por %p142, %p143
      %p145 = scmp.ne.s32.totalorder %s136, %s137
      %p146 = scmp.eq.s32.totalorder %s32, 0
      %p147 = por %p145, %p146
      %p148 = scmp.ne.s32.totalorder %s136, %s137
      %p149 = scmp.eq.s32.totalorder %s33, 1
      %p150 = por %p148, %p149
      %p152 = scmp.ne.s32.totalorder %s137, %s151
      %p153 = scmp.eq.s32.totalorder %s33, 0
      %p154 = por %p152, %p153
      %s156 = sadd.s32 %s155, 1
      %p159 = scmp.eq.s32.totalorder %s27, 1
      %p160 = scmp.ne.s32.totalorder %s155, %s157
      %p161 = scmp.eq.s32.totalorder %s27, 0
      %p162 = por %p160, %p161
      %p163 = scmp.ne.s32.totalorder %s155, %s157
      %p164 = scmp.eq.s32.totalorder %s32, 1
      %p165 = por %p163, %p164
      %p166 = scmp.ne.s32.totalorder %s157, %s158
      %p167 = scmp.eq.s32.totalorder %s32, 0
      %p168 = por %p166, %p167
      %p169 = scmp.ne.s32.totalorder %s157, %s158
      %p170 = scmp.eq.s32.totalorder %s33, 1
      %p171 = por %p169, %p170
      %p173 = scmp.ne.s32.totalorder %s158, %s172
      %p174 = scmp.eq.s32.totalorder %s33, 0
      %p175 = por %p173, %p174
      %s176 = ssub.s32 %s27, %s34
      %p177 = scmp.eq.s32.totalorder %s176, 0
      %s179 = sadd.s32 %s178, 1
      %s180 = scalar_select %p177, %s178, %s179
      %p183 = pneg %p177
      %p184 = scmp.eq.s32.totalorder %s27, 1
      %p185 = por %p183, %p184
      %p186 = scmp.ne.s32.totalorder %s178, %s181
      %p187 = scmp.eq.s32.totalorder %s27, 0
      %p188 = por %p186, %p187
      %p189 = scmp.ne.s32.totalorder %s178, %s181
      %p190 = scmp.eq.s32.totalorder %s32, 1
      %p191 = por %p189, %p190
      %p192 = scmp.ne.s32.totalorder %s181, %s182
      %p193 = scmp.eq.s32.totalorder %s32, 0
      %p194 = por %p192, %p193
      %p195 = scmp.ne.s32.totalorder %s181, %s182
      %p196 = scmp.eq.s32.totalorder %s33, 1
      %p197 = por %p195, %p196
      %p199 = scmp.ne.s32.totalorder %s182, %s198
      %p200 = scmp.eq.s32.totalorder %s33, 0
      %p201 = por %p199, %p200
      %s202 = ssub.s32 %s27, %s34
      %p203 = scmp.eq.s32.totalorder %s202, 0
      %s205 = sadd.s32 %s204, 1
      %s206 = scalar_select %p203, %s204, %s205
      %p209 = pneg %p203
      %p210 = scmp.eq.s32.totalorder %s27, 1
      %p211 = por %p209, %p210
      %p212 = scmp.ne.s32.totalorder %s204, %s207
      %p213 = scmp.eq.s32.totalorder %s27, 0
      %p214 = por %p212, %p213
      %p215 = scmp.ne.s32.totalorder %s204, %s207
      %p216 = scmp.eq.s32.totalorder %s32, 1
      %p217 = por %p215, %p216
      %p218 = scmp.ne.s32.totalorder %s207, %s208
      %p219 = scmp.eq.s32.totalorder %s32, 0
      %p220 = por %p218, %p219
      %p221 = scmp.ne.s32.totalorder %s207, %s208
      %p222 = scmp.eq.s32.totalorder %s33, 1
      %p223 = por %p221, %p222
      %p225 = scmp.ne.s32.totalorder %s208, %s224
      %p226 = scmp.eq.s32.totalorder %s33, 0
      %p227 = por %p225, %p226
      %p228 = scmp.le.s32.totalorder 1, %s27
      %p229 = scmp.lt.s32.totalorder %s27, 3
      %p230 = pnand %p228, %p229
      %p231 = pneg %p230
      // Predicated region
      $region9: #{tpu_custom_call.1} parent=5 // pred_check
        _
      $region10: #{tpu_custom_call.1} parent=5 // pred_check_branch
        %233 = sbr.rel (%p230) target = $region12
      $region11: #{tpu_custom_call.1} parent=5 // pred_region
        %s234 = ssub.s32 %s27, 1
        // Predicated region
        $region13: #{tpu_custom_call.1} parent=11 // pred_check
          %p235 = pneg %p126
        $region14: #{tpu_custom_call.1} parent=11 // pred_check_branch
          %237 = sbr.rel (%p235) target = $region16
        $region15: #{tpu_custom_call.1} parent=11 // pred_region
          %239 = vsyncadd [#allocation9], 0
          %s240 = sshll.u32 %s3, 4
          %s241 = int_to_ptr.hbm [resolvable:$true] %s240
          %s242 = sshll.u32 [#allocation8], 4
          %s243 = int_to_ptr.vmem [resolvable:$true] %s242
          %248 = dma.hbm_to_vmem [thread:$0]  %s241, 1024, %s243, [#allocation9], 512, 512, 32
        $region16: #{tpu_custom_call.1} parent=11 // pred_fallthru
          _
        // Predicated region
        $region17: #{tpu_custom_call.1} parent=11 // pred_check
          %p249 = pneg %p147
        $region18: #{tpu_custom_call.1} parent=11 // pred_check_branch
          %251 = sbr.rel (%p249) target = $region20
        $region19: #{tpu_custom_call.1} parent=11 // pred_region
          %253 = vsyncadd [#allocation9], 0
          %s254 = sshll.u32 %s4, 4
          %s255 = int_to_ptr.hbm [resolvable:$true] %s254
          %s256 = sshll.u32 [#allocation10], 4
          %s257 = int_to_ptr.vmem [resolvable:$true] %s256
          %262 = dma.hbm_to_vmem [thread:$0]  %s255, 8192, %s257, [#allocation9], 512, 512, 32
        $region20: #{tpu_custom_call.1} parent=11 // pred_fallthru
          _
        // Predicated region
        $region21: #{tpu_custom_call.1} parent=11 // pred_check
          %p263 = pneg %p168
        $region22: #{tpu_custom_call.1} parent=11 // pred_check_branch
          %265 = sbr.rel (%p263) target = $region24
        $region23: #{tpu_custom_call.1} parent=11 // pred_region
          _
        $region24: #{tpu_custom_call.1} parent=11 // pred_fallthru
          _
      $region12: #{tpu_custom_call.1} parent=5 // pred_fallthru
        _
      %p266 = scmp.lt.s32.totalorder %s27, 2
      // Predicated region
      $region25: #{tpu_custom_call.1} parent=5 // pred_check
        %p267 = pneg %p266
      $region26: #{tpu_custom_call.1} parent=5 // pred_check_branch
        %269 = sbr.rel (%p267) target = $region28
      $region27: #{tpu_custom_call.1} parent=5 // pred_region
        // Predicated region
        $region29: #{tpu_custom_call.1} parent=27 // pred_check
          %p270 = pneg %p47
        $region30: #{tpu_custom_call.1} parent=27 // pred_check_branch
          %272 = sbr.rel (%p270) target = $region32
        $region31: #{tpu_custom_call.1} parent=27 // pred_region
          %s273 = sand.u32 %s37, 1
          %s274 = scalar_lea.sflag [#allocation3], %s273
          %s275 = sand.u32 %s37, 1
          %s276 = smul.addr %s275, 8
          %s277 = scalar_lea.vmem [#allocation2], %s276
          %279 = vsyncadd %s274, 0
          %s280 = smul.addr %s27, 8
          %s281 = scalar_lea.hbm %s0, %s280
          %s283 = sshll.u32 %s281, 4
          %s284 = int_to_ptr.hbm [resolvable:$true] %s283
          %s285 = sshll.u32 %s277, 4
          %s286 = int_to_ptr.vmem [resolvable:$true] %s285
          %288 = dma.hbm_to_vmem [thread:$0]  %s284, 128, %s286, %s274
        $region32: #{tpu_custom_call.1} parent=27 // pred_fallthru
          _
        // Predicated region
        $region33: #{tpu_custom_call.1} parent=27 // pred_check
          %p289 = pneg %p73
        $region34: #{tpu_custom_call.1} parent=27 // pred_check_branch
          %291 = sbr.rel (%p289) target = $region36
        $region35: #{tpu_custom_call.1} parent=27 // pred_region
          %s292 = sand.u32 %s27, 1
          %s293 = scalar_lea.sflag [#allocation6], %s292
          %s294 = sand.u32 %s63, 1
          %s295 = smul.addr %s294, 8
          %s296 = scalar_lea.vmem [#allocation5], %s295
          %298 = vsyncadd %s293, 0
          %s299 = smul.addr %s27, 8
          %s300 = scalar_lea.hbm %s1, %s299
          %s302 = sshll.u32 %s300, 4
          %s303 = int_to_ptr.hbm [resolvable:$true] %s302
          %s304 = sshll.u32 %s296, 4
          %s305 = int_to_ptr.vmem [resolvable:$true] %s304
          %307 = dma.hbm_to_vmem [thread:$0]  %s303, 128, %s305, %s293
        $region36: #{tpu_custom_call.1} parent=27 // pred_fallthru
          _
        // Predicated region
        $region37: #{tpu_custom_call.1} parent=27 // pred_check
          %p308 = pneg %p99
        $region38: #{tpu_custom_call.1} parent=27 // pred_check_branch
          %310 = sbr.rel (%p308) target = $region40
        $region39: #{tpu_custom_call.1} parent=27 // pred_region
          %s311 = sand.u32 %s27, 1
          %s312 = scalar_lea.sflag [#allocation6], %s311
          %s313 = sand.u32 %s89, 1
          %s314 = smul.addr %s313, 8
          %s315 = scalar_lea.vmem [#allocation7], %s314
          %317 = vsyncadd %s312, 0
          %s318 = smul.addr %s27, 8
          %s319 = scalar_lea.hbm %s2, %s318
          %s321 = sshll.u32 %s319, 4
          %s322 = int_to_ptr.hbm [resolvable:$true] %s321
          %s323 = sshll.u32 %s315, 4
          %s324 = int_to_ptr.vmem [resolvable:$true] %s323
          %326 = dma.hbm_to_vmem [thread:$0]  %s322, 128, %s324, %s312
        $region40: #{tpu_custom_call.1} parent=27 // pred_fallthru
          _
      $region28: #{tpu_custom_call.1} parent=5 // pred_fallthru
        _
      %p327 = scmp.le.s32.totalorder 1, %s27
      %p328 = scmp.lt.s32.totalorder %s27, 3
      %p329 = pnand %p327, %p328
      %p330 = pneg %p329
      // Predicated region
      $region41: #{tpu_custom_call.1} parent=5 // pred_check
        _
      $region42: #{tpu_custom_call.1} parent=5 // pred_check_branch
        %332 = sbr.rel (%p329) target = $region44
      $region43: #{tpu_custom_call.1} parent=5 // pred_region
        %s333 = ssub.s32 %s27, 1
        %s334 = sand.u32 %s40, 1
        %s335 = scalar_lea.sflag [#allocation3], %s334
        %s336 = sand.u32 %s40, 1
        %s337 = smul.addr %s336, 8
        %s338 = scalar_lea.vmem [#allocation2], %s337
        // Predicated region
        $region45: #{tpu_custom_call.1} parent=43 // pred_check
          %p339 = pneg %p53
        $region46: #{tpu_custom_call.1} parent=43 // pred_check_branch
          %341 = sbr.rel (%p339) target = $region48
        $region47: #{tpu_custom_call.1} parent=43 // pred_region
          %343 = dma.done %s335, 128
        $region48: #{tpu_custom_call.1} parent=43 // pred_fallthru
          _
        %s344 = sand.u32 %s32, 1
        %s345 = scalar_lea.sflag [#allocation6], %s344
        %s346 = sand.u32 %s66, 1
        %s347 = smul.addr %s346, 8
        %s348 = scalar_lea.vmem [#allocation5], %s347
        // Predicated region
        $region49: #{tpu_custom_call.1} parent=43 // pred_check
          %p349 = pneg %p79
        $region50: #{tpu_custom_call.1} parent=43 // pred_check_branch
          %351 = sbr.rel (%p349) target = $region52
        $region51: #{tpu_custom_call.1} parent=43 // pred_region
          %353 = dma.done %s345, 128
        $region52: #{tpu_custom_call.1} parent=43 // pred_fallthru
          _
        %s354 = sand.u32 %s32, 1
        %s355 = scalar_lea.sflag [#allocation6], %s354
        %s356 = sand.u32 %s92, 1
        %s357 = smul.addr %s356, 8
        %s358 = scalar_lea.vmem [#allocation7], %s357
        // Predicated region
        $region53: #{tpu_custom_call.1} parent=43 // pred_check
          %p359 = pneg %p105
        $region54: #{tpu_custom_call.1} parent=43 // pred_check_branch
          %361 = sbr.rel (%p359) target = $region56
        $region55: #{tpu_custom_call.1} parent=43 // pred_region
          %363 = dma.done %s355, 128
        $region56: #{tpu_custom_call.1} parent=43 // pred_fallthru
          _
        // Predicated region
        $region57: #{tpu_custom_call.1} parent=43 // pred_check
          %p364 = pneg %p126
        $region58: #{tpu_custom_call.1} parent=43 // pred_check_branch
          %366 = sbr.rel (%p364) target = $region60
        $region59: #{tpu_custom_call.1} parent=43 // pred_region
          %368 = dma.done [#allocation9], 1024
        $region60: #{tpu_custom_call.1} parent=43 // pred_fallthru
          _
        // Predicated region
        $region61: #{tpu_custom_call.1} parent=43 // pred_check
          %p369 = pneg %p147
        $region62: #{tpu_custom_call.1} parent=43 // pred_check_branch
          %371 = sbr.rel (%p369) target = $region64
        $region63: #{tpu_custom_call.1} parent=43 // pred_region
          %373 = dma.done [#allocation9], 8192
        $region64: #{tpu_custom_call.1} parent=43 // pred_fallthru
          _
        %s374 = sand.u32 %s40, 1
        %s375 = scalar_lea.sflag [#allocation3], %s374
        %s376 = sand.u32 %s40, 1
        %s377 = smul.addr %s376, 8
        %s378 = scalar_lea.vmem [#allocation2], %s377
        %p379 = pneg %p53
        %p380 = pneg %p50
        %s381 = sand.u32 %s32, 1
        %s382 = scalar_lea.sflag [#allocation6], %s381
        %s383 = sand.u32 %s66, 1
        %s384 = smul.addr %s383, 8
        %s385 = scalar_lea.vmem [#allocation5], %s384
        %p386 = pneg %p79
        %p387 = pneg %p76
        %s388 = sand.u32 %s32, 1
        %s389 = scalar_lea.sflag [#allocation6], %s388
        %s390 = sand.u32 %s92, 1
        %s391 = smul.addr %s390, 8
        %s392 = scalar_lea.vmem [#allocation7], %s391
        %p393 = pneg %p105
        %p394 = pneg %p102
        %p395 = pneg %p126
        %p396 = pneg %p123
        %p397 = pneg %p147
        %p398 = pneg %p144
        %p399 = pneg %p168
        %p400 = pneg %p165
        %p401 = pneg %p194
        %p402 = pneg %p191
        %s403 = sand.u32 %s181, 1
        %s404 = scalar_lea.sflag [#allocation4], %s403
        %s405 = sand.u32 %s181, 1
        %s406 = smul.addr %s405, 8
        %s407 = scalar_lea.vmem [#allocation11], %s406
        %p408 = pneg %p220
        %p409 = pneg %p217
        %s410 = sand.u32 %s207, 1
        %s411 = scalar_lea.sflag [#allocation13], %s410
        %s412 = sand.u32 %s207, 1
        %s413 = smul.addr %s412, 8
        %s414 = scalar_lea.vmem [#allocation12], %s413
        %v415 = vld [vmem:[%s338] sm:$0xff]
        %v416 = vld [vmem:[#allocation8] sm:$0xff]
        %v417 = vld [vmem:[#allocation8 + $0x8] sm:$0xff]
        %v418 = vld [vmem:[#allocation8 + $0x10] sm:$0xff]
        %v419 = vld [vmem:[#allocation8 + $0x18] sm:$0xff]
        %v420 = vld [vmem:[#allocation8 + $0x20] sm:$0xff]
        %v421 = vld [vmem:[#allocation8 + $0x28] sm:$0xff]
        %v422 = vld [vmem:[#allocation8 + $0x30] sm:$0xff]
        %v423 = vld [vmem:[#allocation8 + $0x38] sm:$0xff]
        %v424 = vld [vmem:[%s348] sm:$0xff]
        %v425 = vld [vmem:[#allocation10] sm:$0xff]
        %v426 = vld [vmem:[#allocation10 + $0x8] sm:$0xff]
        %v427 = vld [vmem:[#allocation10 + $0x10] sm:$0xff]
        %v428 = vld [vmem:[#allocation10 + $0x18] sm:$0xff]
        %v429 = vld [vmem:[#allocation10 + $0x20] sm:$0xff]
        %v430 = vld [vmem:[#allocation10 + $0x28] sm:$0xff]
        %v431 = vld [vmem:[#allocation10 + $0x30] sm:$0xff]
        %v432 = vld [vmem:[#allocation10 + $0x38] sm:$0xff]
        %v433 = vld [vmem:[#allocation10 + $0x40] sm:$0xff]
        %v434 = vld [vmem:[#allocation10 + $0x48] sm:$0xff]
        %v435 = vld [vmem:[#allocation10 + $0x50] sm:$0xff]
        %v436 = vld [vmem:[#allocation10 + $0x58] sm:$0xff]
        %v437 = vld [vmem:[#allocation10 + $0x60] sm:$0xff]
        %v438 = vld [vmem:[#allocation10 + $0x68] sm:$0xff]
        %v439 = vld [vmem:[#allocation10 + $0x70] sm:$0xff]
        %v440 = vld [vmem:[#allocation10 + $0x78] sm:$0xff]
        %v441 = vld [vmem:[#allocation10 + $0x80] sm:$0xff]
        %v442 = vld [vmem:[#allocation10 + $0x88] sm:$0xff]
        %v443 = vld [vmem:[#allocation10 + $0x90] sm:$0xff]
        %v444 = vld [vmem:[#allocation10 + $0x98] sm:$0xff]
        %v445 = vld [vmem:[#allocation10 + $0xa0] sm:$0xff]
        %v446 = vld [vmem:[#allocation10 + $0xa8] sm:$0xff]
        %v447 = vld [vmem:[#allocation10 + $0xb0] sm:$0xff]
        %v448 = vld [vmem:[#allocation10 + $0xb8] sm:$0xff]
        %v449 = vld [vmem:[#allocation10 + $0xc0] sm:$0xff]
        %v450 = vld [vmem:[#allocation10 + $0xc8] sm:$0xff]
        %v451 = vld [vmem:[#allocation10 + $0xd0] sm:$0xff]
        %v452 = vld [vmem:[#allocation10 + $0xd8] sm:$0xff]
        %v453 = vld [vmem:[#allocation10 + $0xe0] sm:$0xff]
        %v454 = vld [vmem:[#allocation10 + $0xe8] sm:$0xff]
        %v455 = vld [vmem:[#allocation10 + $0xf0] sm:$0xff]
        %v456 = vld [vmem:[#allocation10 + $0xf8] sm:$0xff]
        %v457 = vld [vmem:[#allocation10 + $0x100] sm:$0xff]
        %v458 = vld [vmem:[#allocation10 + $0x108] sm:$0xff]
        %v459 = vld [vmem:[#allocation10 + $0x110] sm:$0xff]
        %v460 = vld [vmem:[#allocation10 + $0x118] sm:$0xff]
        %v461 = vld [vmem:[#allocation10 + $0x120] sm:$0xff]
        %v462 = vld [vmem:[#allocation10 + $0x128] sm:$0xff]
        %v463 = vld [vmem:[#allocation10 + $0x130] sm:$0xff]
        %v464 = vld [vmem:[#allocation10 + $0x138] sm:$0xff]
        %v465 = vld [vmem:[#allocation10 + $0x140] sm:$0xff]
        %v466 = vld [vmem:[#allocation10 + $0x148] sm:$0xff]
        %v467 = vld [vmem:[#allocation10 + $0x150] sm:$0xff]
        %v468 = vld [vmem:[#allocation10 + $0x158] sm:$0xff]
        %v469 = vld [vmem:[#allocation10 + $0x160] sm:$0xff]
        %v470 = vld [vmem:[#allocation10 + $0x168] sm:$0xff]
        %v471 = vld [vmem:[#allocation10 + $0x170] sm:$0xff]
        %v472 = vld [vmem:[#allocation10 + $0x178] sm:$0xff]
        %v473 = vld [vmem:[#allocation10 + $0x180] sm:$0xff]
        %v474 = vld [vmem:[#allocation10 + $0x188] sm:$0xff]
        %v475 = vld [vmem:[#allocation10 + $0x190] sm:$0xff]
        %v476 = vld [vmem:[#allocation10 + $0x198] sm:$0xff]
        %v477 = vld [vmem:[#allocation10 + $0x1a0] sm:$0xff]
        %v478 = vld [vmem:[#allocation10 + $0x1a8] sm:$0xff]
        %v479 = vld [vmem:[#allocation10 + $0x1b0] sm:$0xff]
        %v480 = vld [vmem:[#allocation10 + $0x1b8] sm:$0xff]
        %v481 = vld [vmem:[#allocation10 + $0x1c0] sm:$0xff]
        %v482 = vld [vmem:[#allocation10 + $0x1c8] sm:$0xff]
        %v483 = vld [vmem:[#allocation10 + $0x1d0] sm:$0xff]
        %v484 = vld [vmem:[#allocation10 + $0x1d8] sm:$0xff]
        %v485 = vld [vmem:[#allocation10 + $0x1e0] sm:$0xff]
        %v486 = vld [vmem:[#allocation10 + $0x1e8] sm:$0xff]
        %v487 = vld [vmem:[#allocation10 + $0x1f0] sm:$0xff]
        %v488 = vld [vmem:[#allocation10 + $0x1f8] sm:$0xff]
        %489 = vmatpush.msra.mxu0 %v485
        %490 = vmatpush.msra.mxu0 %v481
        %491 = vmatpush.msra.mxu0 %v477
        %492 = vmatpush.msra.mxu0 %v473
        %493 = vmatpush.msra.mxu0 %v469
        %494 = vmatpush.msra.mxu0 %v465
        %495 = vmatpush.msra.mxu0 %v461
        %496 = vmatpush.msra.mxu0 %v457
        %497 = vmatpush.msra.mxu0 %v453
        %498 = vmatpush.msra.mxu0 %v449
        %499 = vmatpush.msra.mxu0 %v445
        %500 = vmatpush.msra.mxu0 %v441
        %501 = vmatpush.msra.mxu0 %v437
        %502 = vmatpush.msra.mxu0 %v433
        %503 = vmatpush.msra.mxu0 %v429
        %504 = vmatpush.msra.mxu0 %v425
        %505 = vmatmul.f32.gmra.mxu0 %v424
        %v506 = vpop.f32.mrf.mxu0
        %v507 = vadd.f32 0.0, %v506
        %508 = vdwg.mxu0
        %509 = vmatpush.msra.mxu0 %v486
        %510 = vmatpush.msra.mxu0 %v482
        %511 = vmatpush.msra.mxu0 %v478
        %512 = vmatpush.msra.mxu0 %v474
        %513 = vmatpush.msra.mxu0 %v470
        %514 = vmatpush.msra.mxu0 %v466
        %515 = vmatpush.msra.mxu0 %v462
        %516 = vmatpush.msra.mxu0 %v458
        %517 = vmatpush.msra.mxu0 %v454
        %518 = vmatpush.msra.mxu0 %v450
        %519 = vmatpush.msra.mxu0 %v446
        %520 = vmatpush.msra.mxu0 %v442
        %521 = vmatpush.msra.mxu0 %v438
        %522 = vmatpush.msra.mxu0 %v434
        %523 = vmatpush.msra.mxu0 %v430
        %524 = vmatpush.msra.mxu0 %v426
        %525 = vmatmul.f32.gmra.mxu0 %v424
        %v526 = vpop.f32.mrf.mxu0
        %v527 = vadd.f32 0.0, %v526
        %528 = vdwg.mxu0
        %529 = vmatpush.msra.mxu0 %v487
        %530 = vmatpush.msra.mxu0 %v483
        %531 = vmatpush.msra.mxu0 %v479
        %532 = vmatpush.msra.mxu0 %v475
        %533 = vmatpush.msra.mxu0 %v471
        %534 = vmatpush.msra.mxu0 %v467
        %535 = vmatpush.msra.mxu0 %v463
        %536 = vmatpush.msra.mxu0 %v459
        %537 = vmatpush.msra.mxu0 %v455
        %538 = vmatpush.msra.mxu0 %v451
        %539 = vmatpush.msra.mxu0 %v447
        %540 = vmatpush.msra.mxu0 %v443
        %541 = vmatpush.msra.mxu0 %v439
        %542 = vmatpush.msra.mxu0 %v435
        %543 = vmatpush.msra.mxu0 %v431
        %544 = vmatpush.msra.mxu0 %v427
        %545 = vmatmul.f32.gmra.mxu0 %v424
        %v546 = vpop.f32.mrf.mxu0
        %v547 = vadd.f32 0.0, %v546
        %548 = vdwg.mxu0
        %549 = vmatpush.msra.mxu0 %v488
        %550 = vmatpush.msra.mxu0 %v484
        %551 = vmatpush.msra.mxu0 %v480
        %552 = vmatpush.msra.mxu0 %v476
        %553 = vmatpush.msra.mxu0 %v472
        %554 = vmatpush.msra.mxu0 %v468
        %555 = vmatpush.msra.mxu0 %v464
        %556 = vmatpush.msra.mxu0 %v460
        %557 = vmatpush.msra.mxu0 %v456
        %558 = vmatpush.msra.mxu0 %v452
        %559 = vmatpush.msra.mxu0 %v448
        %560 = vmatpush.msra.mxu0 %v444
        %561 = vmatpush.msra.mxu0 %v440
        %562 = vmatpush.msra.mxu0 %v436
        %563 = vmatpush.msra.mxu0 %v432
        %564 = vmatpush.msra.mxu0 %v428
        %565 = vmatmul.f32.gmra.mxu0 %v424
        %v566 = vpop.f32.mrf.mxu0
        %v567 = vadd.f32 0.0, %v566
        %568 = vdwg.mxu0
        %vm569 = vcmask 130048
        %v571 = vsel %vm569, %v415, 0
        %573 = vmatpush.msra.mxu0 0.0
        %574 = vmatpush.msra.mxu0 0.0
        %575 = vmatpush.msra.mxu0 0.0
        %576 = vmatpush.msra.mxu0 0.0
        %577 = vmatpush.msra.mxu0 0.0
        %578 = vmatpush.msra.mxu0 0.0
        %579 = vmatpush.msra.mxu0 0.0
        %580 = vmatpush.msra.mxu0 0.0
        %581 = vmatpush.msra.mxu0 0.0
        %582 = vmatpush.msra.mxu0 0.0
        %583 = vmatpush.msra.mxu0 0.0
        %584 = vmatpush.msra.mxu0 0.0
        %585 = vmatpush.msra.mxu0 0.0
        %586 = vmatpush.msra.mxu0 0.0
        %587 = vmatpush.msra.mxu0 %v420
        %588 = vmatpush.msra.mxu0 %v416
        %589 = vmatmul.f32.gmra.mxu0 %v571
        %v590 = vpop.f32.mrf.mxu0
        %v591 = vadd.f32 %v507, %v590
        %592 = vdwg.mxu0
        %593 = vmatpush.msra.mxu0 0.0
        %594 = vmatpush.msra.mxu0 0.0
        %595 = vmatpush.msra.mxu0 0.0
        %596 = vmatpush.msra.mxu0 0.0
        %597 = vmatpush.msra.mxu0 0.0
        %598 = vmatpush.msra.mxu0 0.0
        %599 = vmatpush.msra.mxu0 0.0
        %600 = vmatpush.msra.mxu0 0.0
        %601 = vmatpush.msra.mxu0 0.0
        %602 = vmatpush.msra.mxu0 0.0
        %603 = vmatpush.msra.mxu0 0.0
        %604 = vmatpush.msra.mxu0 0.0
        %605 = vmatpush.msra.mxu0 0.0
        %606 = vmatpush.msra.mxu0 0.0
        %607 = vmatpush.msra.mxu0 %v421
        %608 = vmatpush.msra.mxu0 %v417
        %609 = vmatmul.f32.gmra.mxu0 %v571
        %v610 = vpop.f32.mrf.mxu0
        %v611 = vadd.f32 %v527, %v610
        %612 = vdwg.mxu0
        %613 = vmatpush.msra.mxu0 0.0
        %614 = vmatpush.msra.mxu0 0.0
        %615 = vmatpush.msra.mxu0 0.0
        %616 = vmatpush.msra.mxu0 0.0
        %617 = vmatpush.msra.mxu0 0.0
        %618 = vmatpush.msra.mxu0 0.0
        %619 = vmatpush.msra.mxu0 0.0
        %620 = vmatpush.msra.mxu0 0.0
        %621 = vmatpush.msra.mxu0 0.0
        %622 = vmatpush.msra.mxu0 0.0
        %623 = vmatpush.msra.mxu0 0.0
        %624 = vmatpush.msra.mxu0 0.0
        %625 = vmatpush.msra.mxu0 0.0
        %626 = vmatpush.msra.mxu0 0.0
        %627 = vmatpush.msra.mxu0 %v422
        %628 = vmatpush.msra.mxu0 %v418
        %629 = vmatmul.f32.gmra.mxu0 %v571
        %v630 = vpop.f32.mrf.mxu0
        %v631 = vadd.f32 %v547, %v630
        %632 = vdwg.mxu0
        %633 = vmatpush.msra.mxu0 0.0
        %634 = vmatpush.msra.mxu0 0.0
        %635 = vmatpush.msra.mxu0 0.0
        %636 = vmatpush.msra.mxu0 0.0
        %637 = vmatpush.msra.mxu0 0.0
        %638 = vmatpush.msra.mxu0 0.0
        %639 = vmatpush.msra.mxu0 0.0
        %640 = vmatpush.msra.mxu0 0.0
        %641 = vmatpush.msra.mxu0 0.0
        %642 = vmatpush.msra.mxu0 0.0
        %643 = vmatpush.msra.mxu0 0.0
        %644 = vmatpush.msra.mxu0 0.0
        %645 = vmatpush.msra.mxu0 0.0
        %646 = vmatpush.msra.mxu0 0.0
        %647 = vmatpush.msra.mxu0 %v423
        %648 = vmatpush.msra.mxu0 %v419
        %649 = vmatmul.f32.gmra.mxu0 %v571
        %v650 = vpop.f32.mrf.mxu0
        %v651 = vadd.f32 %v567, %v650
        %652 = vdwg.mxu0
        %v653 = vld [vmem:[%s5] sm:$0xf]
        %v655 = vperm.slane %v653, 0
        %v656 = vperm.slane %v653, 1
        %v657 = vperm.slane %v653, 2
        %v658 = vperm.slane %v653, 3
        %v663 = vadd.f32 %v591, %v655
        %v664 = vadd.f32 %v611, %v656
        %v665 = vadd.f32 %v631, %v657
        %v666 = vadd.f32 %v651, %v658
        %v667 = vxor.u32 %v663, 2147483648
        %v668 = vxor.u32 %v664, 2147483648
        %v669 = vxor.u32 %v665, 2147483648
        %v670 = vxor.u32 %v666, 2147483648
        %v671 = vmul.f32 %v667, 1.442695
        %v672 = vpow.pop %v671
        %v673 = vmul.f32 %v668, 1.442695
        %v674 = vpow.pop %v673
        %v675 = vmul.f32 %v669, 1.442695
        %v676 = vpow.pop %v675
        %v677 = vmul.f32 %v670, 1.442695
        %v678 = vpow.pop %v677
        %v679 = vadd.f32 %v672, 1.0
        %v680 = vadd.f32 %v674, 1.0
        %v681 = vadd.f32 %v676, 1.0
        %v682 = vadd.f32 %v678, 1.0
        %v683 = vrcp.pop %v679
        %v684 = vmul.f32 %v679, %v683
        %v685 = vsub.f32 1.0, %v684
        %v686 = vmul.f32 %v683, %v685
        %v687 = vadd.f32 %v683, %v686
        %vm688 = vweird.f32 %v679
        %vm689 = vweird.f32 %v683
        %vm690 = vmor %vm688, %vm689
        %v691 = vsel %vm690, %v683, %v687
        %v692 = vand.u32 2147483647, %v679
        %vm693 = vcmp.eq.f32.partialorder %v692, 8.507059e+37
        %v694 = vand.u32 %v679, 2147483648
        %v695 = vor.u32 1.1754944e-38, %v694
        %v696 = vsel %vm693, %v695, %v691
        %v697 = vmul.f32 1.0, %v696
        %v698 = vrcp.pop %v680
        %v699 = vmul.f32 %v680, %v698
        %v700 = vsub.f32 1.0, %v699
        %v701 = vmul.f32 %v698, %v700
        %v702 = vadd.f32 %v698, %v701
        %vm703 = vweird.f32 %v680
        %vm704 = vweird.f32 %v698
        %vm705 = vmor %vm703, %vm704
        %v706 = vsel %vm705, %v698, %v702
        %v707 = vand.u32 2147483647, %v680
        %vm708 = vcmp.eq.f32.partialorder %v707, 8.507059e+37
        %v709 = vand.u32 %v680, 2147483648
        %v710 = vor.u32 1.1754944e-38, %v709
        %v711 = vsel %vm708, %v710, %v706
        %v712 = vmul.f32 1.0, %v711
        %v713 = vrcp.pop %v681
        %v714 = vmul.f32 %v681, %v713
        %v715 = vsub.f32 1.0, %v714
        %v716 = vmul.f32 %v713, %v715
        %v717 = vadd.f32 %v713, %v716
        %vm718 = vweird.f32 %v681
        %vm719 = vweird.f32 %v713
        %vm720 = vmor %vm718, %vm719
        %v721 = vsel %vm720, %v713, %v717
        %v722 = vand.u32 2147483647, %v681
        %vm723 = vcmp.eq.f32.partialorder %v722, 8.507059e+37
        %v724 = vand.u32 %v681, 2147483648
        %v725 = vor.u32 1.1754944e-38, %v724
        %v726 = vsel %vm723, %v725, %v721
        %v727 = vmul.f32 1.0, %v726
        %v728 = vrcp.pop %v682
        %v729 = vmul.f32 %v682, %v728
        %v730 = vsub.f32 1.0, %v729
        %v731 = vmul.f32 %v728, %v730
        %v732 = vadd.f32 %v728, %v731
        %vm733 = vweird.f32 %v682
        %vm734 = vweird.f32 %v728
        %vm735 = vmor %vm733, %vm734
        %v736 = vsel %vm735, %v728, %v732
        %v737 = vand.u32 2147483647, %v682
        %vm738 = vcmp.eq.f32.partialorder %v737, 8.507059e+37
        %v739 = vand.u32 %v682, 2147483648
        %v740 = vor.u32 1.1754944e-38, %v739
        %v741 = vsel %vm738, %v740, %v736
        %v742 = vmul.f32 1.0, %v741
        %v743 = vld [vmem:[%s358] sm:$0xff]
        %v744 = vmul.f32 %v712, %v743
        %v745 = vadd.f32 %v744, %v727
        %v746 = vsub.f32 %v745, %v697
        %v747 = vxor.u32 %v746, 2147483648
        %v748 = vmul.f32 %v747, 1.442695
        %v749 = vpow.pop %v748
        %v750 = vadd.f32 %v749, 1.0
        %v751 = vrcp.pop %v750
        %v752 = vmul.f32 %v750, %v751
        %v753 = vsub.f32 1.0, %v752
        %v754 = vmul.f32 %v751, %v753
        %v755 = vadd.f32 %v751, %v754
        %vm756 = vweird.f32 %v750
        %vm757 = vweird.f32 %v751
        %vm758 = vmor %vm756, %vm757
        %v759 = vsel %vm758, %v751, %v755
        %v760 = vand.u32 2147483647, %v750
        %vm761 = vcmp.eq.f32.partialorder %v760, 8.507059e+37
        %v762 = vand.u32 %v750, 2147483648
        %v763 = vor.u32 1.1754944e-38, %v762
        %v764 = vsel %vm761, %v763, %v759
        %v765 = vmul.f32 1.0, %v764
        %v766 = vsub.f32 %v765, %v742
        %767 = vst [vmem:[%s407] sm:$0xff] %v766
        %768 = vst [vmem:[%s414] sm:$0xff] %v746
        %s769 = sand.u32 %s181, 1
        %s770 = scalar_lea.sflag [#allocation4], %s769
        %s771 = sand.u32 %s181, 1
        %s772 = smul.addr %s771, 8
        %s773 = scalar_lea.vmem [#allocation11], %s772
        %s774 = sand.u32 %s207, 1
        %s775 = scalar_lea.sflag [#allocation13], %s774
        %s776 = sand.u32 %s207, 1
        %s777 = smul.addr %s776, 8
        %s778 = scalar_lea.vmem [#allocation12], %s777
        // Predicated region
        $region65: #{tpu_custom_call.1} parent=43 // pred_check
          %p779 = pneg %p191
        $region66: #{tpu_custom_call.1} parent=43 // pred_check_branch
          %781 = sbr.rel (%p779) target = $region68
        $region67: #{tpu_custom_call.1} parent=43 // pred_region
          %783 = vsyncadd %s770, 0
          %s784 = smul.addr %s32, 8
          %s785 = scalar_lea.hbm %s6, %s784
          %s787 = sshll.u32 %s773, 4
          %s788 = int_to_ptr.vmem [resolvable:$true] %s787
          %s789 = sshll.u32 %s785, 4
          %s790 = int_to_ptr.hbm [resolvable:$true] %s789
          %792 = dma.vmem_to_hbm [thread:$0]  %s788, 128, %s790, %s770
        $region68: #{tpu_custom_call.1} parent=43 // pred_fallthru
          _
        // Predicated region
        $region69: #{tpu_custom_call.1} parent=43 // pred_check
          %p793 = pneg %p217
        $region70: #{tpu_custom_call.1} parent=43 // pred_check_branch
          %795 = sbr.rel (%p793) target = $region72
        $region71: #{tpu_custom_call.1} parent=43 // pred_region
          %797 = vsyncadd %s775, 0
          %s798 = smul.addr %s32, 8
          %s799 = scalar_lea.hbm %s7, %s798
          %s801 = sshll.u32 %s778, 4
          %s802 = int_to_ptr.vmem [resolvable:$true] %s801
          %s803 = sshll.u32 %s799, 4
          %s804 = int_to_ptr.hbm [resolvable:$true] %s803
          %806 = dma.vmem_to_hbm [thread:$0]  %s802, 128, %s804, %s775
        $region72: #{tpu_custom_call.1} parent=43 // pred_fallthru
          _
      $region44: #{tpu_custom_call.1} parent=5 // pred_fallthru
        _
      %p807 = scmp.le.s32.totalorder 2, %s27
      // Predicated region
      $region73: #{tpu_custom_call.1} parent=5 // pred_check
        %p808 = pneg %p807
      $region74: #{tpu_custom_call.1} parent=5 // pred_check_branch
        %810 = sbr.rel (%p808) target = $region76
      $region75: #{tpu_custom_call.1} parent=5 // pred_region
        %s811 = ssub.s32 %s27, 2
        // Predicated region
        $region77: #{tpu_custom_call.1} parent=75 // pred_check
          %p812 = pneg %p197
        $region78: #{tpu_custom_call.1} parent=75 // pred_check_branch
          %814 = sbr.rel (%p812) target = $region80
        $region79: #{tpu_custom_call.1} parent=75 // pred_region
          %s815 = sand.u32 %s182, 1
          %s816 = scalar_lea.sflag [#allocation4], %s815
          %s817 = sand.u32 %s182, 1
          %s818 = smul.addr %s817, 8
          %s819 = scalar_lea.vmem [#allocation11], %s818
          %821 = dma.done %s816, 128
        $region80: #{tpu_custom_call.1} parent=75 // pred_fallthru
          _
        // Predicated region
        $region81: #{tpu_custom_call.1} parent=75 // pred_check
          %p822 = pneg %p223
        $region82: #{tpu_custom_call.1} parent=75 // pred_check_branch
          %824 = sbr.rel (%p822) target = $region84
        $region83: #{tpu_custom_call.1} parent=75 // pred_region
          %s825 = sand.u32 %s208, 1
          %s826 = scalar_lea.sflag [#allocation13], %s825
          %s827 = sand.u32 %s208, 1
          %s828 = smul.addr %s827, 8
          %s829 = scalar_lea.vmem [#allocation12], %s828
          %831 = dma.done %s826, 128
        $region84: #{tpu_custom_call.1} parent=75 // pred_fallthru
          _
      $region76: #{tpu_custom_call.1} parent=5 // pred_fallthru
        _
    $region6: #{tpu_custom_call.1} parent=1 // loop_footer
      %s31 = sadd.s32 1, %s27
    $region7: #{tpu_custom_call.1} parent=1 // loop_footer_branch
      %26 = sbr.rel target = $region3
    $region8: #{tpu_custom_call.1} parent=1 // loop_exit
      _
    %832 = vsyncpa [#allocation3], 1
    %s833 = scalar_lea.sflag [#allocation3], 1
    %834 = vsyncpa %s833, 1
    %835 = vsyncpa [#allocation6], 1
    %s836 = scalar_lea.sflag [#allocation6], 1
    %837 = vsyncpa %s836, 1
    %838 = vsyncpa [#allocation9], 1
    %839 = vsyncpa [#allocation4], 1
    %s840 = scalar_lea.sflag [#allocation4], 1
    %841 = vsyncpa %s840, 1
    %842 = vsyncpa [#allocation13], 1
    %s843 = scalar_lea.sflag [#allocation13], 1
    %844 = vsyncpa %s843, 1

</llo_original>
